<compile_context>
chip_gen: v6e
topology: v6e:2x2x1
jax: 0.10.0
libtpu: 0.0.40
codegen_flags: <defaults>
</compile_context>

<pallas_src>
import functools

import jax
import jax.numpy as jnp
import numpy as np
from jax.experimental import pallas as pl
from jax.experimental.pallas import tpu as pltpu


def _round_up(x, m):
    return ((x + m - 1) // m) * m


def _attention_relevance_kernel(
    ms_ref,    # [TB, H]          market_state tile (compute dtype)
    lvn_ref,   # [TB*N8, H]       flattened, level-padded lvn_features tile
    wq_ref,    # [H, Hp]          (wq / sqrt(H)).T, zero-padded cols
    bq_ref,    # [1, Hp]          bq / sqrt(H), zero-padded (f32)
    wkv1_ref,  # [H, 2*Hp+Hhp]    [wk.T | wv.T | w1.T], each segment 128-aligned
    bkv1_ref,  # [1, 2*Hp+Hhp]
    w2_ref,    # [Hhp, 1]         relevance_head layer-2 weight column, zero-padded rows
    b2_ref,    # [1, 1]  (SMEM)   relevance_head layer-2 bias (scalar)
    wo_ref,    # [Hp, Hp]         wo.T, zero-padded rows/cols
    bo_ref,    # [1, Hp]
    wf_ref,    # [TB, Hp]  OUT    output-projected weighted features (cols >= H are 0)
    rel_ref,   # [TB, N8]  OUT    relevance scores (cols >= n_levels are padding)
    *,
    n_levels,  # true number of LVN levels (<= N8), static
):
    TB = ms_ref.shape[0]
    Hp = wq_ref.shape[1]
    N8 = lvn_ref.shape[0] // TB

    # ---- query projection (1/sqrt(H) already folded into wq/bq) ----
    q = jnp.dot(ms_ref[...], wq_ref[...],
                preferred_element_type=jnp.float32) + bq_ref[...]            # [TB, Hp] f32

    # ---- fused K | V | relevance-hidden projection: one MXU pass ----
    proj = jnp.dot(lvn_ref[...], wkv1_ref[...],
                   preferred_element_type=jnp.float32) + bkv1_ref[...]       # [TB*N8, 2Hp+Hhp]
    # All segment boundaries are multiples of 128 lanes -> free views.
    keys = proj[:, 0:Hp]                                                     # [TB*N8, Hp]
    vals = proj[:, Hp:2 * Hp]                                                # [TB*N8, Hp]
    h1 = jnp.maximum(proj[:, 2 * Hp:], 0.0)                                  # [TB*N8, Hhp]

    # N8 % 8 == 0, so these reshapes are tile-aligned views (no relayout copies).
    keys3 = keys.reshape(TB, N8, Hp)
    vals3 = vals.reshape(TB, N8, Hp)

    # ---- attention scores on the MXU (batched [1,Hp] x [Hp,N8]) + softmax ----
    scores = jnp.einsum('bqh,bnh->bqn', q.reshape(TB, 1, Hp), keys3,
                        preferred_element_type=jnp.float32).reshape(TB, N8)  # [TB, N8]
    if n_levels != N8:
        # Mask out host-side zero-padded levels (static branch).
        level = jax.lax.broadcasted_iota(jnp.int32, (TB, N8), 1)
        scores = jnp.where(level < n_levels, scores, -1e9)
    scores = scores - jnp.max(scores, axis=-1, keepdims=True)
    e = jnp.exp(scores)
    attn = e / jnp.sum(e, axis=-1, keepdims=True)        # exact divide: tiny [TB, N8]

    # ---- relevance head tail on the MXU: sigmoid(h1 @ w2 + b2) ----
    logit = jnp.dot(h1, w2_ref[...], preferred_element_type=jnp.float32)     # [TB*N8, 1]
    relevance = jax.nn.sigmoid(logit.reshape(TB, N8) + b2_ref[0, 0])         # [TB, N8]

    # ---- combine attention with relevance, renormalise (exact divide) ----
    combined = attn * relevance
    combined = combined / (jnp.sum(combined, axis=-1, keepdims=True) + 1e-8)

    # ---- weighted sum over levels (MXU) + output projection ----
    wsum = jnp.einsum('bqn,bnh->bqh', combined.reshape(TB, 1, N8), vals3,
                      preferred_element_type=jnp.float32).reshape(TB, Hp)    # [TB, Hp]
    wf = jnp.dot(wsum, wo_ref[...], preferred_element_type=jnp.float32) + bo_ref[...]

    # ---- lane-dense stores: wf block is a multiple of 128 lanes (unmasked vst);
    #      only the small relevance segment uses a masked store. ----
    wf_ref[...] = wf
    rel_ref[...] = relevance


def pack_attention_relevance_params(params, compute_dtype=jnp.float32):
    """One-time host-side weight packing. Hoist out of the per-call path and reuse."""
    H = params['wq'].shape[0]
    Hh = params['w1'].shape[0]
    Hp = _round_up(H, 128)
    Hhp = _round_up(Hh, 128)
    scale = jnp.float32(1.0 / np.sqrt(H))

    def pad_cols(w_t, width):                 # [in, out] -> [in, width]
        return jnp.pad(w_t, ((0, 0), (0, width - w_t.shape[1])))

    def pad_vec(b, width):                    # [out] -> [1, width]
        return jnp.pad(b, (0, width - b.shape[0])).reshape(1, width)

    wq_t = pad_cols((params['wq'] * scale).T, Hp)                             # [H, Hp]
    bq = pad_vec(params['bq'] * scale, Hp)                                    # [1, Hp]
    wkv1 = jnp.concatenate([pad_cols(params['wk'].T, Hp),
                            pad_cols(params['wv'].T, Hp),
                            pad_cols(params['w1'].T, Hhp)], axis=1)           # [H, 2Hp+Hhp]
    bkv1 = jnp.concatenate([pad_vec(params['bk'], Hp),
                            pad_vec(params['bv'], Hp),
                            pad_vec(params['b1'], Hhp)], axis=1)              # [1, 2Hp+Hhp]
    w2_col = jnp.pad(params['w2'].T, ((0, Hhp - Hh), (0, 0)))                 # [Hhp, 1]
    b2 = params['b2'].reshape(1, 1).astype(jnp.float32)
    wo_t = jnp.pad(params['wo'].T, ((0, Hp - H), (0, Hp - H)))                # [Hp, Hp]
    bo = pad_vec(params['bo'], Hp)                                            # [1, Hp]

    return {
        'H': H, 'Hh': Hh, 'Hp': Hp, 'Hhp': Hhp, 'compute_dtype': compute_dtype,
        # Only the operands of the two big activation x weight matmuls get the
        # (optional) bf16 cast; everything downstream stays f32.
        'wq_t': wq_t.astype(compute_dtype), 'bq': bq.astype(jnp.float32),
        'wkv1': wkv1.astype(compute_dtype), 'bkv1': bkv1.astype(jnp.float32),
        'w2_col': w2_col.astype(jnp.float32), 'b2': b2,
        'wo_t': wo_t.astype(jnp.float32), 'bo': bo.astype(jnp.float32),
    }


def _default_batch_tile(B, N8, H, compute_dtype):
    """Pick a batch tile: >=4 pipelined grid steps with ~<=2 MiB lvn slabs when possible."""
    itemsize = jnp.dtype(compute_dtype).itemsize
    sub = 16 if itemsize == 2 else 8          # bf16 refs need (16,128) min tiles
    cands = [t for t in range(sub, B, sub) if B % t == 0]
    if not cands:
        return B                              # small / odd batch: single step
    budget = 2 * 1024 * 1024
    good = [t for t in cands if t * N8 * H * itemsize <= budget and B // t >= 4]
    if good:
        return max(good)
    two = [t for t in cands if B // t >= 2]   # at least let v7x use both TensorCores
    return max(two) if two else B


def attention_relevance_forward(market_state, lvn_features, packed, *, batch_tile=None):
    """AttentionRelevanceModule.forward (mask=None) as a single pallas_call."""
    B, H = market_state.shape
    N = lvn_features.shape[1]
    assert H == packed['H'], "packed params do not match hidden_dim"
    Hp, Hhp = packed['Hp'], packed['Hhp']
    cd = packed['compute_dtype']

    # Pad the level axis to a multiple of 8 so [TB*N8,H] <-> [TB,N8,Hp] reshapes stay views.
    N8 = _round_up(N, 8)
    if N8 != N:
        lvn_features = jnp.pad(lvn_features, ((0, 0), (0, N8 - N), (0, 0)))

    if batch_tile is None:
        batch_tile = _default_batch_tile(B, N8, H, cd)
    TB = batch_tile
    sub = 16 if jnp.dtype(cd).itemsize == 2 else 8
    assert B % TB == 0 and (TB == B or TB % sub == 0), (
        f"batch_tile must divide batch and be the full batch or a multiple of {sub}")
    grid = (B // TB,)

    ms = market_state.astype(cd)
    lvn_flat = lvn_features.reshape(B * N8, H).astype(cd)

    kernel = functools.partial(_attention_relevance_kernel, n_levels=N)
    out_shape = (jax.ShapeDtypeStruct((B, Hp), jnp.float32),
                 jax.ShapeDtypeStruct((B, N8), jnp.float32))
    out_specs = (pl.BlockSpec((TB, Hp), lambda i: (i, 0)),
                 pl.BlockSpec((TB, N8), lambda i: (i, 0)))
    compiler_params = pltpu.CompilerParams(
        dimension_semantics=("parallel",),            # megacore-shardable batch axis
        vmem_limit_bytes=48 * 1024 * 1024,            # headroom under v7x's 64 MiB physical VMEM
    )

    def build(single_buffer_weights):
        def wspec(shape):
            # Weights: same block every step -> VMEM-resident. Request a single
            # buffer (halves weight VMEM) when this JAX version supports it.
            kw = {'pipeline_mode': pl.Buffered(1)} if single_buffer_weights else {}
            return pl.BlockSpec(shape, lambda i: (0,) * len(shape), **kw)

        in_specs = [
            pl.BlockSpec((TB, H), lambda i: (i, 0)),            # market_state tile
            pl.BlockSpec((TB * N8, H), lambda i: (i, 0)),       # lvn tile (double-buffered)
            wspec((H, Hp)), wspec((1, Hp)),                     # wq_t, bq
            wspec((H, 2 * Hp + Hhp)), wspec((1, 2 * Hp + Hhp)), # wkv1, bkv1
            wspec((Hhp, 1)),                                    # w2_col
            pl.BlockSpec((1, 1), lambda i: (0, 0),
                         memory_space=pltpu.MemorySpace.SMEM),  # b2 (scalar path)
            wspec((Hp, Hp)), wspec((1, Hp)),                    # wo_t, bo
        ]
        return pl.pallas_call(kernel, out_shape=out_shape, grid=grid,
                              in_specs=in_specs, out_specs=out_specs,
                              compiler_params=compiler_params)

    args = (ms, lvn_flat, packed['wq_t'], packed['bq'], packed['wkv1'], packed['bkv1'],
            packed['w2_col'], packed['b2'], packed['wo_t'], packed['bo'])
    try:
        wf_pad, rel_pad = build(True)(*args)
    except Exception:
        # pipeline_mode=pl.Buffered(1) not accepted by this JAX version:
        # fall back to default (double-buffered) weight blocks.
        wf_pad, rel_pad = build(False)(*args)

    return wf_pad[:, :H], rel_pad[:, :N]


def _reference_forward(market_state, lvn_features, p):
    """Pure-JAX reference identical to the PyTorch forward (mask=None)."""
    H = market_state.shape[-1]
    q = market_state @ p['wq'].T + p['bq']                                   # [B, H]
    keys = jnp.einsum('bnh,oh->bno', lvn_features, p['wk']) + p['bk']
    vals = jnp.einsum('bnh,oh->bno', lvn_features, p['wv']) + p['bv']
    scores = jnp.einsum('bh,bnh->bn', q, keys) / np.sqrt(H)
    attn = jax.nn.softmax(scores, axis=-1)
    h1 = jax.nn.relu(jnp.einsum('bnh,oh->bno', lvn_features, p['w1']) + p['b1'])
    rel = jax.nn.sigmoid(jnp.einsum('bnk,ok->bno', h1, p['w2'])[..., 0] + p['b2'][0])
    comb = attn * rel
    comb = comb / (comb.sum(-1, keepdims=True) + 1e-8)
    wf = jnp.einsum('bn,bnh->bh', comb, vals)
    wf = wf @ p['wo'].T + p['bo']
    return wf, rel


def _init_params(key, hidden_dim):
    """Deterministic synthetic init (PyTorch Linear shapes: W [out, in], b [out])."""
    ks = jax.random.split(key, 12)
    H, Hh = hidden_dim, hidden_dim // 2
    s = 1.0 / np.sqrt(H)
    return {
        'wq': jax.random.uniform(ks[0], (H, H), jnp.float32, -s, s),
        'bq': jax.random.uniform(ks[1], (H,), jnp.float32, -s, s),
        'wk': jax.random.uniform(ks[2], (H, H), jnp.float32, -s, s),
        'bk': jax.random.uniform(ks[3], (H,), jnp.float32, -s, s),
        'wv': jax.random.uniform(ks[4], (H, H), jnp.float32, -s, s),
        'bv': jax.random.uniform(ks[5], (H,), jnp.float32, -s, s),
        'w1': jax.random.uniform(ks[6], (Hh, H), jnp.float32, -s, s),
        'b1': jax.random.uniform(ks[7], (Hh,), jnp.float32, -s, s),
        'w2': jax.random.uniform(ks[8], (1, Hh), jnp.float32, -s, s),
        'b2': jax.random.uniform(ks[9], (1,), jnp.float32, -s, s),
        'wo': jax.random.uniform(ks[10], (H, H), jnp.float32, -s, s),
        'bo': jax.random.uniform(ks[11], (H,), jnp.float32, -s, s),
    }


if __name__ == "__main__":
    B, N, H = 2, 8, 32  # batch, n_levels, hidden_dim

    key = jax.random.PRNGKey(0)
    k_ms, k_lvn, k_par = jax.random.split(key, 3)
    market_state = jax.random.normal(k_ms, (B, H), jnp.float32)
    lvn_features = jax.random.normal(k_lvn, (B, N, H), jnp.float32)
    params = _init_params(k_par, H)

    # Pack weights once (hoisted out of the per-call path), then run the kernel.
    packed = pack_attention_relevance_params(params)  # pass compute_dtype=jnp.bfloat16 in prod
    wf, rel = attention_relevance_forward(market_state, lvn_features, packed)
    jax.block_until_ready((wf, rel))

    wf_ref, rel_ref = _reference_forward(market_state, lvn_features, params)
    # MXU f32 matmul pass rounding vs the XLA reference leaves small (<~1e-3) drift.
    np.testing.assert_allclose(np.asarray(wf), np.asarray(wf_ref), rtol=2e-3, atol=2e-3)
    np.testing.assert_allclose(np.asarray(rel), np.asarray(rel_ref), rtol=2e-3, atol=2e-3)

    print("KERNEL_OK")
</pallas_src>

<mosaic_0001>
module attributes {stable_mosaic.version = 11 : i64} {
  func.func @_attention_relevance_kernel(%arg0: i32, %arg1: memref<2x32xf32, #tpu.memory_space<vmem>>, %arg2: memref<16x32xf32, #tpu.memory_space<vmem>>, %arg3: memref<32x128xf32, #tpu.memory_space<vmem>>, %arg4: memref<1x128xf32, #tpu.memory_space<vmem>>, %arg5: memref<32x384xf32, #tpu.memory_space<vmem>>, %arg6: memref<1x384xf32, #tpu.memory_space<vmem>>, %arg7: memref<128x1xf32, #tpu.memory_space<vmem>>, %arg8: memref<1x1xf32, #tpu.memory_space<smem>>, %arg9: memref<128x128xf32, #tpu.memory_space<vmem>>, %arg10: memref<1x128xf32, #tpu.memory_space<vmem>>, %arg11: memref<2x128xf32, #tpu.memory_space<vmem>>, %arg12: memref<2x8xf32, #tpu.memory_space<vmem>>) attributes {dimension_semantics = [#tpu.dimension_semantics<parallel>], iteration_bounds = array<i64: 1>, scalar_prefetch = 0 : i64, scratch_operands = 0 : i64, tpu.core_type = #tpu.core_type<tc>, window_params = [{transform_indices = @transform_0, window_bounds = array<i64: 2, 32>}, {transform_indices = @transform_1, window_bounds = array<i64: 16, 32>}, {pipeline_mode = #tpu.pipeline_mode<synchronous>, transform_indices = @transform_2, window_bounds = array<i64: 32, 128>}, {pipeline_mode = #tpu.pipeline_mode<synchronous>, transform_indices = @transform_3, window_bounds = array<i64: 1, 128>}, {pipeline_mode = #tpu.pipeline_mode<synchronous>, transform_indices = @transform_4, window_bounds = array<i64: 32, 384>}, {pipeline_mode = #tpu.pipeline_mode<synchronous>, transform_indices = @transform_5, window_bounds = array<i64: 1, 384>}, {pipeline_mode = #tpu.pipeline_mode<synchronous>, transform_indices = @transform_6, window_bounds = array<i64: 128, 1>}, {transform_indices = @transform_7, window_bounds = array<i64: 1, 1>}, {pipeline_mode = #tpu.pipeline_mode<synchronous>, transform_indices = @transform_8, window_bounds = array<i64: 128, 128>}, {pipeline_mode = #tpu.pipeline_mode<synchronous>, transform_indices = @transform_9, window_bounds = array<i64: 1, 128>}, {transform_indices = @transform_10, window_bounds = array<i64: 2, 128>}, {transform_indices = @transform_11, window_bounds = array<i64: 2, 8>}]} {
    %c0 = arith.constant 0 : index
    %c0_0 = arith.constant 0 : index
    %0 = vector.load %arg1[%c0, %c0_0] : memref<2x32xf32, #tpu.memory_space<vmem>>, vector<2x32xf32>
    %c0_1 = arith.constant 0 : index
    %c0_2 = arith.constant 0 : index
    %1 = vector.load %arg3[%c0_1, %c0_2] : memref<32x128xf32, #tpu.memory_space<vmem>>, vector<32x128xf32>
    %cst = arith.constant dense<0.000000e+00> : vector<2x128xf32>
    %2 = tpu.matmul %0, %1, %cst {dimension_numbers = #tpu.dot_dimension_numbers<[1], [0], [0], [1], [0, 0, 1, 1], [], []>} : vector<2x32xf32>, vector<32x128xf32>, vector<2x128xf32> -> vector<2x128xf32>
    %c0_3 = arith.constant 0 : index
    %c0_4 = arith.constant 0 : index
    %3 = vector.load %arg4[%c0_3, %c0_4] : memref<1x128xf32, #tpu.memory_space<vmem>>, vector<1x128xf32>
    %4 = vector.broadcast %3 : vector<1x128xf32> to vector<2x128xf32>
    %5 = arith.addf %2, %4 : vector<2x128xf32>
    %c0_5 = arith.constant 0 : index
    %c0_6 = arith.constant 0 : index
    %6 = vector.load %arg2[%c0_5, %c0_6] : memref<16x32xf32, #tpu.memory_space<vmem>>, vector<16x32xf32>
    %c0_7 = arith.constant 0 : index
    %c0_8 = arith.constant 0 : index
    %7 = vector.load %arg5[%c0_7, %c0_8] : memref<32x384xf32, #tpu.memory_space<vmem>>, vector<32x384xf32>
    %cst_9 = arith.constant dense<0.000000e+00> : vector<16x384xf32>
    %8 = tpu.matmul %6, %7, %cst_9 {dimension_numbers = #tpu.dot_dimension_numbers<[1], [0], [0], [1], [0, 0, 1, 1], [], []>} : vector<16x32xf32>, vector<32x384xf32>, vector<16x384xf32> -> vector<16x384xf32>
    %c0_10 = arith.constant 0 : index
    %c0_11 = arith.constant 0 : index
    %9 = vector.load %arg6[%c0_10, %c0_11] : memref<1x384xf32, #tpu.memory_space<vmem>>, vector<1x384xf32>
    %10 = vector.broadcast %9 : vector<1x384xf32> to vector<16x384xf32>
    %11 = arith.addf %8, %10 : vector<16x384xf32>
    %12 = vector.extract_strided_slice %11 {offsets = [0, 0], sizes = [16, 128], strides = [1, 1]} : vector<16x384xf32> to vector<16x128xf32>
    %13 = vector.extract_strided_slice %11 {offsets = [0, 128], sizes = [16, 128], strides = [1, 1]} : vector<16x384xf32> to vector<16x128xf32>
    %14 = vector.extract_strided_slice %11 {offsets = [0, 256], sizes = [16, 128], strides = [1, 1]} : vector<16x384xf32> to vector<16x128xf32>
    %cst_12 = arith.constant 0.000000e+00 : f32
    %15 = vector.broadcast %cst_12 : f32 to vector<16x128xf32>
    %16 = arith.maximumf %14, %15 : vector<16x128xf32>
    %17 = vector.shape_cast %12 : vector<16x128xf32> to vector<2x8x128xf32>
    %18 = vector.shape_cast %13 : vector<16x128xf32> to vector<2x8x128xf32>
    %19 = vector.shape_cast %5 : vector<2x128xf32> to vector<2x1x128xf32>
    "tpu.trace_start"() <{level = 10 : i32, message = "bqh,bnh->bqn"}> : () -> ()
    %cst_13 = arith.constant dense<0.000000e+00> : vector<2x1x8xf32>
    %20 = tpu.matmul %19, %17, %cst_13 {dimension_numbers = #tpu.dot_dimension_numbers<[2], [2], [1], [1], [0, 0, 0, 1, 1, 1], [0], [0]>} : vector<2x1x128xf32>, vector<2x8x128xf32>, vector<2x1x8xf32> -> vector<2x1x8xf32>
    "tpu.trace_stop"() : () -> ()
    %21 = vector.shape_cast %20 : vector<2x1x8xf32> to vector<2x8xf32>
    %cst_14 = arith.constant dense<0xFF800000> : vector<2xf32>
    %22 = vector.multi_reduction <maximumf>, %21, %cst_14 [1] : vector<2x8xf32> to vector<2xf32>
    %23 = vector.shape_cast %22 : vector<2xf32> to vector<2x1xf32>
    %24 = vector.broadcast %23 : vector<2x1xf32> to vector<2x8xf32>
    %25 = arith.subf %21, %24 : vector<2x8xf32>
    %26 = math.exp %25 : vector<2x8xf32>
    %cst_15 = arith.constant dense<0.000000e+00> : vector<2xf32>
    %27 = vector.multi_reduction <add>, %26, %cst_15 [1] : vector<2x8xf32> to vector<2xf32>
    %28 = vector.shape_cast %27 : vector<2xf32> to vector<2x1xf32>
    %29 = vector.broadcast %28 : vector<2x1xf32> to vector<2x8xf32>
    %30 = arith.divf %26, %29 : vector<2x8xf32>
    %c0_16 = arith.constant 0 : index
    %c0_17 = arith.constant 0 : index
    %31 = vector.load %arg7[%c0_16, %c0_17] : memref<128x1xf32, #tpu.memory_space<vmem>>, vector<128x1xf32>
    %cst_18 = arith.constant dense<0.000000e+00> : vector<16x1xf32>
    %32 = tpu.matmul %16, %31, %cst_18 {dimension_numbers = #tpu.dot_dimension_numbers<[1], [0], [0], [1], [0, 0, 1, 1], [], []>} : vector<16x128xf32>, vector<128x1xf32>, vector<16x1xf32> -> vector<16x1xf32>
    %33 = vector.shape_cast %32 : vector<16x1xf32> to vector<2x8xf32>
    %c0_19 = arith.constant 0 : index
    %c0_20 = arith.constant 0 : index
    %34 = memref.load %arg8[%c0_19, %c0_20] : memref<1x1xf32, #tpu.memory_space<smem>>
    %35 = vector.broadcast %34 : f32 to vector<2x8xf32>
    %36 = arith.addf %33, %35 : vector<2x8xf32>
    %37 = arith.negf %36 : vector<2x8xf32>
    %38 = math.exp %37 : vector<2x8xf32>
    %cst_21 = arith.constant 1.000000e+00 : f32
    %39 = vector.broadcast %cst_21 : f32 to vector<2x8xf32>
    %40 = arith.addf %39, %38 : vector<2x8xf32>
    %41 = arith.divf %39, %40 : vector<2x8xf32>
    %42 = arith.mulf %30, %41 : vector<2x8xf32>
    %cst_22 = arith.constant dense<0.000000e+00> : vector<2xf32>
    %43 = vector.multi_reduction <add>, %42, %cst_22 [1] : vector<2x8xf32> to vector<2xf32>
    %44 = vector.shape_cast %43 : vector<2xf32> to vector<2x1xf32>
    %cst_23 = arith.constant 9.99999993E-9 : f32
    %45 = vector.broadcast %cst_23 : f32 to vector<2x1xf32>
    %46 = arith.addf %44, %45 : vector<2x1xf32>
    %47 = vector.broadcast %46 : vector<2x1xf32> to vector<2x8xf32>
    %48 = arith.divf %42, %47 : vector<2x8xf32>
    %49 = vector.shape_cast %48 : vector<2x8xf32> to vector<2x1x8xf32>
    "tpu.trace_start"() <{level = 10 : i32, message = "bqn,bnh->bqh"}> : () -> ()
    %cst_24 = arith.constant dense<0.000000e+00> : vector<2x1x128xf32>
    %50 = tpu.matmul %49, %18, %cst_24 {dimension_numbers = #tpu.dot_dimension_numbers<[2], [1], [1], [2], [0, 0, 0, 1, 1, 2], [0], [0]>} : vector<2x1x8xf32>, vector<2x8x128xf32>, vector<2x1x128xf32> -> vector<2x1x128xf32>
    "tpu.trace_stop"() : () -> ()
    %51 = vector.shape_cast %50 : vector<2x1x128xf32> to vector<2x128xf32>
    %c0_25 = arith.constant 0 : index
    %c0_26 = arith.constant 0 : index
    %52 = vector.load %arg9[%c0_25, %c0_26] : memref<128x128xf32, #tpu.memory_space<vmem>>, vector<128x128xf32>
    %cst_27 = arith.constant dense<0.000000e+00> : vector<2x128xf32>
    %53 = tpu.matmul %51, %52, %cst_27 {dimension_numbers = #tpu.dot_dimension_numbers<[1], [0], [0], [1], [0, 0, 1, 1], [], []>} : vector<2x128xf32>, vector<128x128xf32>, vector<2x128xf32> -> vector<2x128xf32>
    %c0_28 = arith.constant 0 : index
    %c0_29 = arith.constant 0 : index
    %54 = vector.load %arg10[%c0_28, %c0_29] : memref<1x128xf32, #tpu.memory_space<vmem>>, vector<1x128xf32>
    %55 = vector.broadcast %54 : vector<1x128xf32> to vector<2x128xf32>
    %56 = arith.addf %53, %55 : vector<2x128xf32>
    %c0_30 = arith.constant 0 : index
    %c0_31 = arith.constant 0 : index
    %57 = vector.load %arg11[%c0_30, %c0_31] : memref<2x128xf32, #tpu.memory_space<vmem>>, vector<2x128xf32>
    tpu.vector_store %arg11[%c0_30, %c0_31], %56 {strides = array<i32>} : memref<2x128xf32, #tpu.memory_space<vmem>>, vector<2x128xf32>,
    %c0_32 = arith.constant 0 : index
    %c0_33 = arith.constant 0 : index
    %58 = vector.load %arg12[%c0_32, %c0_33] : memref<2x8xf32, #tpu.memory_space<vmem>>, vector<2x8xf32>
    tpu.vector_store %arg12[%c0_32, %c0_33], %41 {strides = array<i32>} : memref<2x8xf32, #tpu.memory_space<vmem>>, vector<2x8xf32>,
    return
  }
  func.func @transform_0(%arg0: i32) -> (i32, i32) {
    %c0_i32 = arith.constant 0 : i32
    %c0_i32_0 = arith.constant 0 : i32
    return %arg0, %c0_i32 : i32, i32
  }
  func.func @transform_1(%arg0: i32) -> (i32, i32) {
    %c0_i32 = arith.constant 0 : i32
    %c0_i32_0 = arith.constant 0 : i32
    return %arg0, %c0_i32 : i32, i32
  }
  func.func @transform_2(%arg0: i32) -> (i32, i32) {
    %c0_i32 = arith.constant 0 : i32
    %c0_i32_0 = arith.constant 0 : i32
    %c0_i32_1 = arith.constant 0 : i32
    return %c0_i32, %c0_i32_0 : i32, i32
  }
  func.func @transform_3(%arg0: i32) -> (i32, i32) {
    %c0_i32 = arith.constant 0 : i32
    %c0_i32_0 = arith.constant 0 : i32
    %c0_i32_1 = arith.constant 0 : i32
    return %c0_i32, %c0_i32_0 : i32, i32
  }
  func.func @transform_4(%arg0: i32) -> (i32, i32) {
    %c0_i32 = arith.constant 0 : i32
    %c0_i32_0 = arith.constant 0 : i32
    %c0_i32_1 = arith.constant 0 : i32
    return %c0_i32, %c0_i32_0 : i32, i32
  }
  func.func @transform_5(%arg0: i32) -> (i32, i32) {
    %c0_i32 = arith.constant 0 : i32
    %c0_i32_0 = arith.constant 0 : i32
    %c0_i32_1 = arith.constant 0 : i32
    return %c0_i32, %c0_i32_0 : i32, i32
  }
  func.func @transform_6(%arg0: i32) -> (i32, i32) {
    %c0_i32 = arith.constant 0 : i32
    %c0_i32_0 = arith.constant 0 : i32
    %c0_i32_1 = arith.constant 0 : i32
    return %c0_i32, %c0_i32_0 : i32, i32
  }
  func.func @transform_7(%arg0: i32) -> (i32, i32) {
    %c0_i32 = arith.constant 0 : i32
    %c0_i32_0 = arith.constant 0 : i32
    %c0_i32_1 = arith.constant 0 : i32
    return %c0_i32, %c0_i32_0 : i32, i32
  }
  func.func @transform_8(%arg0: i32) -> (i32, i32) {
    %c0_i32 = arith.constant 0 : i32
    %c0_i32_0 = arith.constant 0 : i32
    %c0_i32_1 = arith.constant 0 : i32
    return %c0_i32, %c0_i32_0 : i32, i32
  }
  func.func @transform_9(%arg0: i32) -> (i32, i32) {
    %c0_i32 = arith.constant 0 : i32
    %c0_i32_0 = arith.constant 0 : i32
    %c0_i32_1 = arith.constant 0 : i32
    return %c0_i32, %c0_i32_0 : i32, i32
  }
  func.func @transform_10(%arg0: i32) -> (i32, i32) {
    %c0_i32 = arith.constant 0 : i32
    %c0_i32_0 = arith.constant 0 : i32
    return %arg0, %c0_i32 : i32, i32
  }
  func.func @transform_11(%arg0: i32) -> (i32, i32) {
    %c0_i32 = arith.constant 0 : i32
    %c0_i32_0 = arith.constant 0 : i32
    return %arg0, %c0_i32 : i32, i32
  }
}

module attributes {stable_mosaic.version = 11 : i64} {
  func.func @_attention_relevance_kernel(%arg0: i32, %arg1: memref<2x32xf32, #tpu.memory_space<vmem>>, %arg2: memref<16x32xf32, #tpu.memory_space<vmem>>, %arg3: memref<32x128xf32, #tpu.memory_space<vmem>>, %arg4: memref<1x128xf32, #tpu.memory_space<vmem>>, %arg5: memref<32x384xf32, #tpu.memory_space<vmem>>, %arg6: memref<1x384xf32, #tpu.memory_space<vmem>>, %arg7: memref<128x1xf32, #tpu.memory_space<vmem>>, %arg8: memref<1x1xf32, #tpu.memory_space<smem>>, %arg9: memref<128x128xf32, #tpu.memory_space<vmem>>, %arg10: memref<1x128xf32, #tpu.memory_space<vmem>>, %arg11: memref<2x128xf32, #tpu.memory_space<vmem>>, %arg12: memref<2x8xf32, #tpu.memory_space<vmem>>) attributes {dimension_semantics = [#tpu.dimension_semantics<parallel>], iteration_bounds = array<i64: 1>, scalar_prefetch = 0 : i64, scratch_operands = 0 : i64, tpu.core_type = #tpu.core_type<tc>, window_params = [{transform_indices = @transform_0, window_bounds = array<i64: 2, 32>}, {transform_indices = @transform_1, window_bounds = array<i64: 16, 32>}, {pipeline_mode = #tpu.pipeline_mode<synchronous>, transform_indices = @transform_2, window_bounds = array<i64: 32, 128>}, {pipeline_mode = #tpu.pipeline_mode<synchronous>, transform_indices = @transform_3, window_bounds = array<i64: 1, 128>}, {pipeline_mode = #tpu.pipeline_mode<synchronous>, transform_indices = @transform_4, window_bounds = array<i64: 32, 384>}, {pipeline_mode = #tpu.pipeline_mode<synchronous>, transform_indices = @transform_5, window_bounds = array<i64: 1, 384>}, {pipeline_mode = #tpu.pipeline_mode<synchronous>, transform_indices = @transform_6, window_bounds = array<i64: 128, 1>}, {transform_indices = @transform_7, window_bounds = array<i64: 1, 1>}, {pipeline_mode = #tpu.pipeline_mode<synchronous>, transform_indices = @transform_8, window_bounds = array<i64: 128, 128>}, {pipeline_mode = #tpu.pipeline_mode<synchronous>, transform_indices = @transform_9, window_bounds = array<i64: 1, 128>}, {transform_indices = @transform_10, window_bounds = array<i64: 2, 128>}, {transform_indices = @transform_11, window_bounds = array<i64: 2, 8>}]} {
    %c0 = arith.constant 0 : index
    %c0_0 = arith.constant 0 : index
    %0 = vector.load %arg1[%c0, %c0_0] : memref<2x32xf32, #tpu.memory_space<vmem>>, vector<2x32xf32>
    %c0_1 = arith.constant 0 : index
    %c0_2 = arith.constant 0 : index
    %1 = vector.load %arg3[%c0_1, %c0_2] : memref<32x128xf32, #tpu.memory_space<vmem>>, vector<32x128xf32>
    %cst = arith.constant dense<0.000000e+00> : vector<2x128xf32>
    %2 = tpu.matmul %0, %1, %cst {dimension_numbers = #tpu.dot_dimension_numbers<[1], [0], [0], [1], [0, 0, 1, 1], [], []>} : vector<2x32xf32>, vector<32x128xf32>, vector<2x128xf32> -> vector<2x128xf32>
    %c0_3 = arith.constant 0 : index
    %c0_4 = arith.constant 0 : index
    %3 = vector.load %arg4[%c0_3, %c0_4] : memref<1x128xf32, #tpu.memory_space<vmem>>, vector<1x128xf32>
    %4 = vector.broadcast %3 : vector<1x128xf32> to vector<2x128xf32>
    %5 = arith.addf %2, %4 : vector<2x128xf32>
    %c0_5 = arith.constant 0 : index
    %c0_6 = arith.constant 0 : index
    %6 = vector.load %arg2[%c0_5, %c0_6] : memref<16x32xf32, #tpu.memory_space<vmem>>, vector<16x32xf32>
    %c0_7 = arith.constant 0 : index
    %c0_8 = arith.constant 0 : index
    %7 = vector.load %arg5[%c0_7, %c0_8] : memref<32x384xf32, #tpu.memory_space<vmem>>, vector<32x384xf32>
    %cst_9 = arith.constant dense<0.000000e+00> : vector<16x384xf32>
    %8 = tpu.matmul %6, %7, %cst_9 {dimension_numbers = #tpu.dot_dimension_numbers<[1], [0], [0], [1], [0, 0, 1, 1], [], []>} : vector<16x32xf32>, vector<32x384xf32>, vector<16x384xf32> -> vector<16x384xf32>
    %c0_10 = arith.constant 0 : index
    %c0_11 = arith.constant 0 : index
    %9 = vector.load %arg6[%c0_10, %c0_11] : memref<1x384xf32, #tpu.memory_space<vmem>>, vector<1x384xf32>
    %10 = vector.broadcast %9 : vector<1x384xf32> to vector<16x384xf32>
    %11 = arith.addf %8, %10 : vector<16x384xf32>
    %12 = vector.extract_strided_slice %11 {offsets = [0, 0], sizes = [16, 128], strides = [1, 1]} : vector<16x384xf32> to vector<16x128xf32>
    %13 = vector.extract_strided_slice %11 {offsets = [0, 128], sizes = [16, 128], strides = [1, 1]} : vector<16x384xf32> to vector<16x128xf32>
    %14 = vector.extract_strided_slice %11 {offsets = [0, 256], sizes = [16, 128], strides = [1, 1]} : vector<16x384xf32> to vector<16x128xf32>
    %cst_12 = arith.constant 0.000000e+00 : f32
    %15 = vector.broadcast %cst_12 : f32 to vector<16x128xf32>
    %16 = arith.maximumf %14, %15 : vector<16x128xf32>
    %17 = vector.shape_cast %12 : vector<16x128xf32> to vector<2x8x128xf32>
    %18 = vector.shape_cast %13 : vector<16x128xf32> to vector<2x8x128xf32>
    %19 = vector.shape_cast %5 : vector<2x128xf32> to vector<2x1x128xf32>
    "tpu.trace_start"() <{level = 10 : i32, message = "bqh,bnh->bqn"}> : () -> ()
    %cst_13 = arith.constant dense<0.000000e+00> : vector<2x1x8xf32>
    %20 = tpu.matmul %19, %17, %cst_13 {dimension_numbers = #tpu.dot_dimension_numbers<[2], [2], [1], [1], [0, 0, 0, 1, 1, 1], [0], [0]>} : vector<2x1x128xf32>, vector<2x8x128xf32>, vector<2x1x8xf32> -> vector<2x1x8xf32>
    "tpu.trace_stop"() : () -> ()
    %21 = vector.shape_cast %20 : vector<2x1x8xf32> to vector<2x8xf32>
    %cst_14 = arith.constant dense<0xFF800000> : vector<2xf32>
    %22 = vector.multi_reduction <maximumf>, %21, %cst_14 [1] : vector<2x8xf32> to vector<2xf32>
    %23 = vector.shape_cast %22 : vector<2xf32> to vector<2x1xf32>
    %24 = vector.broadcast %23 : vector<2x1xf32> to vector<2x8xf32>
    %25 = arith.subf %21, %24 : vector<2x8xf32>
    %26 = math.exp %25 : vector<2x8xf32>
    %cst_15 = arith.constant dense<0.000000e+00> : vector<2xf32>
    %27 = vector.multi_reduction <add>, %26, %cst_15 [1] : vector<2x8xf32> to vector<2xf32>
    %28 = vector.shape_cast %27 : vector<2xf32> to vector<2x1xf32>
    %29 = vector.broadcast %28 : vector<2x1xf32> to vector<2x8xf32>
    %30 = arith.divf %26, %29 : vector<2x8xf32>
    %c0_16 = arith.constant 0 : index
    %c0_17 = arith.constant 0 : index
    %31 = vector.load %arg7[%c0_16, %c0_17] : memref<128x1xf32, #tpu.memory_space<vmem>>, vector<128x1xf32>
    %cst_18 = arith.constant dense<0.000000e+00> : vector<16x1xf32>
    %32 = tpu.matmul %16, %31, %cst_18 {dimension_numbers = #tpu.dot_dimension_numbers<[1], [0], [0], [1], [0, 0, 1, 1], [], []>} : vector<16x128xf32>, vector<128x1xf32>, vector<16x1xf32> -> vector<16x1xf32>
    %33 = vector.shape_cast %32 : vector<16x1xf32> to vector<2x8xf32>
    %c0_19 = arith.constant 0 : index
    %c0_20 = arith.constant 0 : index
    %34 = memref.load %arg8[%c0_19, %c0_20] : memref<1x1xf32, #tpu.memory_space<smem>>
    %35 = vector.broadcast %34 : f32 to vector<2x8xf32>
    %36 = arith.addf %33, %35 : vector<2x8xf32>
    %37 = arith.negf %36 : vector<2x8xf32>
    %38 = math.exp %37 : vector<2x8xf32>
    %cst_21 = arith.constant 1.000000e+00 : f32
    %39 = vector.broadcast %cst_21 : f32 to vector<2x8xf32>
    %40 = arith.addf %39, %38 : vector<2x8xf32>
    %41 = arith.divf %39, %40 : vector<2x8xf32>
    %42 = arith.mulf %30, %41 : vector<2x8xf32>
    %cst_22 = arith.constant dense<0.000000e+00> : vector<2xf32>
    %43 = vector.multi_reduction <add>, %42, %cst_22 [1] : vector<2x8xf32> to vector<2xf32>
    %44 = vector.shape_cast %43 : vector<2xf32> to vector<2x1xf32>
    %cst_23 = arith.constant 9.99999993E-9 : f32
    %45 = vector.broadcast %cst_23 : f32 to vector<2x1xf32>
    %46 = arith.addf %44, %45 : vector<2x1xf32>
    %47 = vector.broadcast %46 : vector<2x1xf32> to vector<2x8xf32>
    %48 = arith.divf %42, %47 : vector<2x8xf32>
    %49 = vector.shape_cast %48 : vector<2x8xf32> to vector<2x1x8xf32>
    "tpu.trace_start"() <{level = 10 : i32, message = "bqn,bnh->bqh"}> : () -> ()
    %cst_24 = arith.constant dense<0.000000e+00> : vector<2x1x128xf32>
    %50 = tpu.matmul %49, %18, %cst_24 {dimension_numbers = #tpu.dot_dimension_numbers<[2], [1], [1], [2], [0, 0, 0, 1, 1, 2], [0], [0]>} : vector<2x1x8xf32>, vector<2x8x128xf32>, vector<2x1x128xf32> -> vector<2x1x128xf32>
    "tpu.trace_stop"() : () -> ()
    %51 = vector.shape_cast %50 : vector<2x1x128xf32> to vector<2x128xf32>
    %c0_25 = arith.constant 0 : index
    %c0_26 = arith.constant 0 : index
    %52 = vector.load %arg9[%c0_25, %c0_26] : memref<128x128xf32, #tpu.memory_space<vmem>>, vector<128x128xf32>
    %cst_27 = arith.constant dense<0.000000e+00> : vector<2x128xf32>
    %53 = tpu.matmul %51, %52, %cst_27 {dimension_numbers = #tpu.dot_dimension_numbers<[1], [0], [0], [1], [0, 0, 1, 1], [], []>} : vector<2x128xf32>, vector<128x128xf32>, vector<2x128xf32> -> vector<2x128xf32>
    %c0_28 = arith.constant 0 : index
    %c0_29 = arith.constant 0 : index
    %54 = vector.load %arg10[%c0_28, %c0_29] : memref<1x128xf32, #tpu.memory_space<vmem>>, vector<1x128xf32>
    %55 = vector.broadcast %54 : vector<1x128xf32> to vector<2x128xf32>
    %56 = arith.addf %53, %55 : vector<2x128xf32>
    %c0_30 = arith.constant 0 : index
    %c0_31 = arith.constant 0 : index
    %57 = vector.load %arg11[%c0_30, %c0_31] : memref<2x128xf32, #tpu.memory_space<vmem>>, vector<2x128xf32>
    tpu.vector_store %arg11[%c0_30, %c0_31], %56 {strides = array<i32>} : memref<2x128xf32, #tpu.memory_space<vmem>>, vector<2x128xf32>,
    %c0_32 = arith.constant 0 : index
    %c0_33 = arith.constant 0 : index
    %58 = vector.load %arg12[%c0_32, %c0_33] : memref<2x8xf32, #tpu.memory_space<vmem>>, vector<2x8xf32>
    tpu.vector_store %arg12[%c0_32, %c0_33], %41 {strides = array<i32>} : memref<2x8xf32, #tpu.memory_space<vmem>>, vector<2x8xf32>,
    return
  }
  func.func @transform_0(%arg0: i32) -> (i32, i32) {
    %c0_i32 = arith.constant 0 : i32
    %c0_i32_0 = arith.constant 0 : i32
    return %arg0, %c0_i32 : i32, i32
  }
  func.func @transform_1(%arg0: i32) -> (i32, i32) {
    %c0_i32 = arith.constant 0 : i32
    %c0_i32_0 = arith.constant 0 : i32
    return %arg0, %c0_i32 : i32, i32
  }
  func.func @transform_2(%arg0: i32) -> (i32, i32) {
    %c0_i32 = arith.constant 0 : i32
    %c0_i32_0 = arith.constant 0 : i32
    %c0_i32_1 = arith.constant 0 : i32
    return %c0_i32, %c0_i32_0 : i32, i32
  }
  func.func @transform_3(%arg0: i32) -> (i32, i32) {
    %c0_i32 = arith.constant 0 : i32
    %c0_i32_0 = arith.constant 0 : i32
    %c0_i32_1 = arith.constant 0 : i32
    return %c0_i32, %c0_i32_0 : i32, i32
  }
  func.func @transform_4(%arg0: i32) -> (i32, i32) {
    %c0_i32 = arith.constant 0 : i32
    %c0_i32_0 = arith.constant 0 : i32
    %c0_i32_1 = arith.constant 0 : i32
    return %c0_i32, %c0_i32_0 : i32, i32
  }
  func.func @transform_5(%arg0: i32) -> (i32, i32) {
    %c0_i32 = arith.constant 0 : i32
    %c0_i32_0 = arith.constant 0 : i32
    %c0_i32_1 = arith.constant 0 : i32
    return %c0_i32, %c0_i32_0 : i32, i32
  }
  func.func @transform_6(%arg0: i32) -> (i32, i32) {
    %c0_i32 = arith.constant 0 : i32
    %c0_i32_0 = arith.constant 0 : i32
    %c0_i32_1 = arith.constant 0 : i32
    return %c0_i32, %c0_i32_0 : i32, i32
  }
  func.func @transform_7(%arg0: i32) -> (i32, i32) {
    %c0_i32 = arith.constant 0 : i32
    %c0_i32_0 = arith.constant 0 : i32
    %c0_i32_1 = arith.constant 0 : i32
    return %c0_i32, %c0_i32_0 : i32, i32
  }
  func.func @transform_8(%arg0: i32) -> (i32, i32) {
    %c0_i32 = arith.constant 0 : i32
    %c0_i32_0 = arith.constant 0 : i32
    %c0_i32_1 = arith.constant 0 : i32
    return %c0_i32, %c0_i32_0 : i32, i32
  }
  func.func @transform_9(%arg0: i32) -> (i32, i32) {
    %c0_i32 = arith.constant 0 : i32
    %c0_i32_0 = arith.constant 0 : i32
    %c0_i32_1 = arith.constant 0 : i32
    return %c0_i32, %c0_i32_0 : i32, i32
  }
  func.func @transform_10(%arg0: i32) -> (i32, i32) {
    %c0_i32 = arith.constant 0 : i32
    %c0_i32_0 = arith.constant 0 : i32
    return %arg0, %c0_i32 : i32, i32
  }
  func.func @transform_11(%arg0: i32) -> (i32, i32) {
    %c0_i32 = arith.constant 0 : i32
    %c0_i32_0 = arith.constant 0 : i32
    return %arg0, %c0_i32 : i32, i32
  }
}

</mosaic_0001>

<llo_original>
// kernel: tpu_custom_call.1
$region0: #{tpu_custom_call.1}
  #allocation0 [shape = 'u32[]', space=smem, size = 0x4, offset = 0x4, fixed_abs, tag = 'smem constant byte address 0x4 - core index']
  #allocation1 [shape = 'u32[144,128]{1,0:T(1,128)}', space=vmem, size = 0x12000, scoped, tag = 'internal scratch']
  #allocation2 [shape = 'f32[1,1]{1,0:T(1,128)S(6)}', space=smem, size = 0x200, scoped, tag = 'scoped memory for tpu_custom_call.1']
  %s0 = inlined_call_operand.vmem [shape: f32[2,32], index: 0, kind: input, shape index: {}]
  %s1 = inlined_call_operand.hbm [shape: f32[16,32], index: 1, kind: input, shape index: {}]
  %s2 = inlined_call_operand.hbm [shape: f32[32,128], index: 2, kind: input, shape index: {}]
  %s3 = inlined_call_operand.vmem [shape: f32[1,128], index: 3, kind: input, shape index: {}]
  %s4 = inlined_call_operand.hbm [shape: f32[32,384], index: 4, kind: input, shape index: {}]
  %s5 = inlined_call_operand.vmem [shape: f32[1,384], index: 5, kind: input, shape index: {}]
  %s6 = inlined_call_operand.vmem [shape: f32[128,1], index: 6, kind: input, shape index: {}]
  %s7 = inlined_call_operand.<no memory space> [shape: f32[1,1], index: 7, kind: input, shape index: {}]
  %s8 = inlined_call_operand.vmem [shape: f32[128,128], index: 8, kind: input, shape index: {}]
  %s9 = inlined_call_operand.vmem [shape: f32[1,128], index: 9, kind: input, shape index: {}]
  %s10 = inlined_call_operand.hbm [shape: f32[2,128], index: 10, kind: output, shape index: {0}]
  %s11 = inlined_call_operand.hbm [shape: f32[2,8], index: 11, kind: output, shape index: {1}]
  %12 = xla_tuple %s10, %s11
  %s13 = sld [smem:[#allocation0]]
  $region70: #{tpu_custom_call.1} parent=0
    _
  %s15 = ssub.s32 1, %s13
  %s16 = scalar_select 0, %s15, %s13
  %17 = sst [smem:[#allocation2]] %s7
  $region1: #{tpu_custom_call.1} parent=0
    #allocation3 [shape = 'u8[8192]{0}', space=vmem, size = 0x2000, scoped, tag = 'input window, operand 1, single buffered']
    #allocation4 [shape = 's32[1]{0}', space=sflag, size = 0x4, scoped, tag = 'scoped memory for tpu_custom_call.1']
    #allocation5 [shape = 's32[1]{0}', space=sflag, size = 0x4, scoped, tag = 'scoped memory for tpu_custom_call.1']
    #allocation6 [shape = 'u8[16384]{0}', space=vmem, size = 0x4000, scoped, tag = 'input window, operand 2, single buffered']
    #allocation7 [shape = 's32[1]{0}', space=sflag, size = 0x4, scoped, tag = 'scoped memory for tpu_custom_call.1']
    #allocation8 [shape = 'u8[49152]{0}', space=vmem, size = 0xc000, scoped, tag = 'input window, operand 4, single buffered']
    #allocation9 [shape = 'u8[1024]{0}', space=vmem, size = 0x400, scoped, tag = 'output window, operand 0, single buffered']
    #allocation10 [shape = 'u8[1024]{0}', space=vmem, size = 0x400, scoped, tag = 'output window, operand 1, single buffered']
    #allocation11 [shape = 's32[1]{0}', space=sflag, size = 0x4, scoped, tag = 'scoped memory for tpu_custom_call.1']
    %18 = vsyncpa [#allocation4], 0
    %19 = vsyncpa [#allocation7], 0
    %20 = vsyncpa [#allocation5], 0
    %21 = vsyncpa [#allocation11], 0
    // Predicated region
    $region2: #{tpu_custom_call.1} parent=1 // pred_check
      _
    $region3: #{tpu_custom_call.1} parent=1 // pred_check_branch
      %23 = sbr.rel (0) target = $region5
    $region4: #{tpu_custom_call.1} parent=1 // pred_region
      _
    $region5: #{tpu_custom_call.1} parent=1 // pred_fallthru
      _
    // Predicated region
    $region6: #{tpu_custom_call.1} parent=1 // pred_check
      _
    $region7: #{tpu_custom_call.1} parent=1 // pred_check_branch
      %25 = sbr.rel (0) target = $region9
    $region8: #{tpu_custom_call.1} parent=1 // pred_region
      %s27 = ssub.s32 256, 256
      %28 = vsyncadd [#allocation4], %s27
      %s29 = sshll.u32 [#allocation3], 4
      %s30 = int_to_ptr.vmem [resolvable:$true] %s29
      %35 = dma.hbm_to_vmem [thread:$0]  %s1, 256, %s30, [#allocation4], 128, 128, 8
    $region9: #{tpu_custom_call.1} parent=1 // pred_fallthru
      _
    // Predicated region
    $region10: #{tpu_custom_call.1} parent=1 // pred_check
      _
    $region11: #{tpu_custom_call.1} parent=1 // pred_check_branch
      %37 = sbr.rel (0) target = $region13
    $region12: #{tpu_custom_call.1} parent=1 // pred_region
      %s39 = ssub.s32 512, 512
      %40 = vsyncadd [#allocation7], %s39
      %s41 = sshll.u32 [#allocation6], 4
      %s42 = int_to_ptr.vmem [resolvable:$true] %s41
      %47 = dma.hbm_to_vmem [thread:$0]  %s2, 512, %s42, [#allocation7], 128, 128, 8
    $region13: #{tpu_custom_call.1} parent=1 // pred_fallthru
      _
    // Predicated region
    $region14: #{tpu_custom_call.1} parent=1 // pred_check
      _
    $region15: #{tpu_custom_call.1} parent=1 // pred_check_branch
      %49 = sbr.rel (0) target = $region17
    $region16: #{tpu_custom_call.1} parent=1 // pred_region
      _
    $region17: #{tpu_custom_call.1} parent=1 // pred_fallthru
      _
    // Predicated region
    $region18: #{tpu_custom_call.1} parent=1 // pred_check
      _
    $region19: #{tpu_custom_call.1} parent=1 // pred_check_branch
      %51 = sbr.rel (0) target = $region21
    $region20: #{tpu_custom_call.1} parent=1 // pred_region
      %s53 = ssub.s32 1536, 1536
      %54 = vsyncadd [#allocation7], %s53
      %s55 = sshll.u32 [#allocation8], 4
      %s56 = int_to_ptr.vmem [resolvable:$true] %s55
      %61 = dma.hbm_to_vmem [thread:$0]  %s4, 1536, %s56, [#allocation7], 384, 384, 24
    $region21: #{tpu_custom_call.1} parent=1 // pred_fallthru
      _
    // Predicated region
    $region22: #{tpu_custom_call.1} parent=1 // pred_check
      _
    $region23: #{tpu_custom_call.1} parent=1 // pred_check_branch
      %63 = sbr.rel (0) target = $region25
    $region24: #{tpu_custom_call.1} parent=1 // pred_region
      _
    $region25: #{tpu_custom_call.1} parent=1 // pred_fallthru
      _
    // Predicated region
    $region26: #{tpu_custom_call.1} parent=1 // pred_check
      _
    $region27: #{tpu_custom_call.1} parent=1 // pred_check_branch
      %65 = sbr.rel (0) target = $region29
    $region28: #{tpu_custom_call.1} parent=1 // pred_region
      _
    $region29: #{tpu_custom_call.1} parent=1 // pred_fallthru
      _
    // Predicated region
    $region30: #{tpu_custom_call.1} parent=1 // pred_check
      _
    $region31: #{tpu_custom_call.1} parent=1 // pred_check_branch
      %67 = sbr.rel (0) target = $region33
    $region32: #{tpu_custom_call.1} parent=1 // pred_region
      _
    $region33: #{tpu_custom_call.1} parent=1 // pred_fallthru
      _
    // Predicated region
    $region34: #{tpu_custom_call.1} parent=1 // pred_check
      _
    $region35: #{tpu_custom_call.1} parent=1 // pred_check_branch
      %69 = sbr.rel (0) target = $region37
    $region36: #{tpu_custom_call.1} parent=1 // pred_region
      _
    $region37: #{tpu_custom_call.1} parent=1 // pred_fallthru
      _
    // Predicated region
    $region38: #{tpu_custom_call.1} parent=1 // pred_check
      _
    $region39: #{tpu_custom_call.1} parent=1 // pred_check_branch
      %71 = sbr.rel (0) target = $region41
    $region40: #{tpu_custom_call.1} parent=1 // pred_region
      _
    $region41: #{tpu_custom_call.1} parent=1 // pred_fallthru
      _
    // Predicated region
    $region42: #{tpu_custom_call.1} parent=1 // pred_check
      _
    $region43: #{tpu_custom_call.1} parent=1 // pred_check_branch
      %73 = sbr.rel (0) target = $region45
    $region44: #{tpu_custom_call.1} parent=1 // pred_region
      %74 = dma.done [#allocation4], 256
    $region45: #{tpu_custom_call.1} parent=1 // pred_fallthru
      _
    // Predicated region
    $region46: #{tpu_custom_call.1} parent=1 // pred_check
      _
    $region47: #{tpu_custom_call.1} parent=1 // pred_check_branch
      %76 = sbr.rel (0) target = $region49
    $region48: #{tpu_custom_call.1} parent=1 // pred_region
      %77 = dma.done [#allocation7], 512
    $region49: #{tpu_custom_call.1} parent=1 // pred_fallthru
      _
    // Predicated region
    $region50: #{tpu_custom_call.1} parent=1 // pred_check
      _
    $region51: #{tpu_custom_call.1} parent=1 // pred_check_branch
      %79 = sbr.rel (0) target = $region53
    $region52: #{tpu_custom_call.1} parent=1 // pred_region
      %80 = dma.done [#allocation7], 1536
    $region53: #{tpu_custom_call.1} parent=1 // pred_fallthru
      _
    %v81 = vld [vmem:[%s0] sm:$0x3]
    %v82 = vld [vmem:[#allocation6] sm:$0xff]
    %v83 = vld [vmem:[#allocation6 + $0x8] sm:$0xff]
    %v84 = vld [vmem:[#allocation6 + $0x10] sm:$0xff]
    %v85 = vld [vmem:[#allocation6 + $0x18] sm:$0xff]
    %v86 = vld [vmem:[%s3] sm:$0x1]
    %v88 = vlaneseq
    %v89 = vshrl.u32 %v88, 7
    %v90 = vsub.s32 0, %v89
    %v91 = vrot.slane %v86, %v90
    %vm93 = vcmask 261120
    %v95 = vsel %vm93, %v81, 0
    %97 = vmatprep.subr.mxu0 0.0
    %98 = vmatpush1.msra.mxu0 0.0
    %99 = vmatprep.subr.mxu0 0.0
    %100 = vmatpush1.msra.mxu0 0.0
    %101 = vmatprep.subr.mxu0 0.0
    %102 = vmatpush1.msra.mxu0 0.0
    %103 = vmatprep.subr.mxu0 0.0
    %104 = vmatpush1.msra.mxu0 0.0
    %105 = vmatprep.subr.mxu0 0.0
    %106 = vmatpush1.msra.mxu0 0.0
    %107 = vmatprep.subr.mxu0 0.0
    %108 = vmatpush1.msra.mxu0 0.0
    %109 = vmatprep.subr.mxu0 0.0
    %110 = vmatpush1.msra.mxu0 0.0
    %111 = vmatprep.subr.mxu0 0.0
    %112 = vmatpush1.msra.mxu0 0.0
    %113 = vmatprep.subr.mxu0 0.0
    %114 = vmatpush1.msra.mxu0 0.0
    %115 = vmatprep.subr.mxu0 0.0
    %116 = vmatpush1.msra.mxu0 0.0
    %117 = vmatprep.subr.mxu0 0.0
    %118 = vmatpush1.msra.mxu0 0.0
    %119 = vmatprep.subr.mxu0 0.0
    %120 = vmatpush1.msra.mxu0 0.0
    %121 = vmatprep.subr.mxu0 0.0
    %122 = vmatpush1.msra.mxu0 %v85
    %123 = vmatprep.subr.mxu0 0.0
    %124 = vmatpush1.msra.mxu0 %v84
    %125 = vmatprep.subr.mxu0 0.0
    %126 = vmatpush1.msra.mxu0 %v83
    %127 = vmatprep.subr.mxu0 0.0
    %128 = vmatpush1.msra.mxu0 %v82
    %129 = vmatprep.subr.mxu0 0.0
    %130 = vmatpush2.msra.mxu0 0.0
    %131 = vmatprep.subr.mxu0 0.0
    %132 = vmatpush2.msra.mxu0 0.0
    %133 = vmatprep.subr.mxu0 0.0
    %134 = vmatpush2.msra.mxu0 0.0
    %135 = vmatprep.subr.mxu0 0.0
    %136 = vmatpush2.msra.mxu0 0.0
    %137 = vmatprep.subr.mxu0 0.0
    %138 = vmatpush2.msra.mxu0 0.0
    %139 = vmatprep.subr.mxu0 0.0
    %140 = vmatpush2.msra.mxu0 0.0
    %141 = vmatprep.subr.mxu0 0.0
    %142 = vmatpush2.msra.mxu0 0.0
    %143 = vmatprep.subr.mxu0 0.0
    %144 = vmatpush2.msra.mxu0 0.0
    %145 = vmatprep.subr.mxu0 0.0
    %146 = vmatpush2.msra.mxu0 0.0
    %147 = vmatprep.subr.mxu0 0.0
    %148 = vmatpush2.msra.mxu0 0.0
    %149 = vmatprep.subr.mxu0 0.0
    %150 = vmatpush2.msra.mxu0 0.0
    %151 = vmatprep.subr.mxu0 0.0
    %152 = vmatpush2.msra.mxu0 0.0
    %153 = vmatprep.subr.mxu0 0.0
    %154 = vmatpush2.msra.mxu0 0.0
    %155 = vmatprep.subr.mxu0 0.0
    %156 = vmatpush2.msra.mxu0 0.0
    %157 = vmatprep.subr.mxu0 0.0
    %158 = vmatpush2.msra.mxu0 0.0
    %159 = vmatprep.subr.mxu0 0.0
    %160 = vmatpush2.msra.mxu0 0.0
    %161 = vmatprep.mubr.f32.mxu0 0.0
    %162 = vmatmul.mubr.f32.gmra.mxu0 %v95
    %v163 = vpop.f32.mrf.mxu0
    %v164 = vadd.f32 %v91, %v163
    %v165 = vpop.f32.mrf.mxu0
    %166 = vdwg.mxu0
    %v167 = vld [vmem:[#allocation3] sm:$0xff]
    %v168 = vld [vmem:[#allocation3 + $0x8] sm:$0xff]
    %v169 = vld [vmem:[#allocation8] sm:$0xff]
    %v170 = vld [vmem:[#allocation8 + $0x8] sm:$0xff]
    %v171 = vld [vmem:[#allocation8 + $0x10] sm:$0xff]
    %v172 = vld [vmem:[#allocation8 + $0x18] sm:$0xff]
    %v173 = vld [vmem:[#allocation8 + $0x20] sm:$0xff]
    %v174 = vld [vmem:[#allocation8 + $0x28] sm:$0xff]
    %v175 = vld [vmem:[#allocation8 + $0x30] sm:$0xff]
    %v176 = vld [vmem:[#allocation8 + $0x38] sm:$0xff]
    %v177 = vld [vmem:[#allocation8 + $0x40] sm:$0xff]
    %v178 = vld [vmem:[#allocation8 + $0x48] sm:$0xff]
    %v179 = vld [vmem:[#allocation8 + $0x50] sm:$0xff]
    %v180 = vld [vmem:[#allocation8 + $0x58] sm:$0xff]
    %v181 = vld [vmem:[%s5] sm:$0x7]
    %v183 = vlaneseq
    %v184 = vshrl.u32 %v183, 7
    %v185 = vsub.s32 0, %v184
    %v186 = vrot.slane %v181, %v185
    %v187 = vlaneseq
    %v188 = vshrl.u32 %v187, 7
    %v189 = vsub.s32 1, %v188
    %v190 = vrot.slane %v181, %v189
    %v191 = vlaneseq
    %v192 = vshrl.u32 %v191, 7
    %v193 = vsub.s32 2, %v192
    %v194 = vrot.slane %v181, %v193
    %v199 = vsel %vm93, %v167, 0
    %v202 = vsel %vm93, %v168, 0
    %204 = vmatprep.subr.mxu0 0.0
    %205 = vmatpush1.msra.mxu0 0.0
    %206 = vmatprep.subr.mxu0 0.0
    %207 = vmatpush1.msra.mxu0 0.0
    %208 = vmatprep.subr.mxu0 0.0
    %209 = vmatpush1.msra.mxu0 0.0
    %210 = vmatprep.subr.mxu0 0.0
    %211 = vmatpush1.msra.mxu0 0.0
    %212 = vmatprep.subr.mxu0 0.0
    %213 = vmatpush1.msra.mxu0 0.0
    %214 = vmatprep.subr.mxu0 0.0
    %215 = vmatpush1.msra.mxu0 0.0
    %216 = vmatprep.subr.mxu0 0.0
    %217 = vmatpush1.msra.mxu0 0.0
    %218 = vmatprep.subr.mxu0 0.0
    %219 = vmatpush1.msra.mxu0 0.0
    %220 = vmatprep.subr.mxu0 0.0
    %221 = vmatpush1.msra.mxu0 0.0
    %222 = vmatprep.subr.mxu0 0.0
    %223 = vmatpush1.msra.mxu0 0.0
    %224 = vmatprep.subr.mxu0 0.0
    %225 = vmatpush1.msra.mxu0 0.0
    %226 = vmatprep.subr.mxu0 0.0
    %227 = vmatpush1.msra.mxu0 0.0
    %228 = vmatprep.subr.mxu0 %v179
    %229 = vmatpush1.msra.mxu0 %v178
    %230 = vmatprep.subr.mxu0 %v176
    %231 = vmatpush1.msra.mxu0 %v175
    %232 = vmatprep.subr.mxu0 %v173
    %233 = vmatpush1.msra.mxu0 %v172
    %234 = vmatprep.subr.mxu0 %v170
    %235 = vmatpush1.msra.mxu0 %v169
    %236 = vmatprep.subr.mxu0 0.0
    %237 = vmatpush2.msra.mxu0 0.0
    %238 = vmatprep.subr.mxu0 0.0
    %239 = vmatpush2.msra.mxu0 0.0
    %240 = vmatprep.subr.mxu0 0.0
    %241 = vmatpush2.msra.mxu0 0.0
    %242 = vmatprep.subr.mxu0 0.0
    %243 = vmatpush2.msra.mxu0 0.0
    %244 = vmatprep.subr.mxu0 0.0
    %245 = vmatpush2.msra.mxu0 0.0
    %246 = vmatprep.subr.mxu0 0.0
    %247 = vmatpush2.msra.mxu0 0.0
    %248 = vmatprep.subr.mxu0 0.0
    %249 = vmatpush2.msra.mxu0 0.0
    %250 = vmatprep.subr.mxu0 0.0
    %251 = vmatpush2.msra.mxu0 0.0
    %252 = vmatprep.subr.mxu0 0.0
    %253 = vmatpush2.msra.mxu0 0.0
    %254 = vmatprep.subr.mxu0 0.0
    %255 = vmatpush2.msra.mxu0 0.0
    %256 = vmatprep.subr.mxu0 0.0
    %257 = vmatpush2.msra.mxu0 0.0
    %258 = vmatprep.subr.mxu0 0.0
    %259 = vmatpush2.msra.mxu0 0.0
    %260 = vmatprep.subr.mxu0 0.0
    %261 = vmatpush2.msra.mxu0 0.0
    %262 = vmatprep.subr.mxu0 0.0
    %263 = vmatpush2.msra.mxu0 0.0
    %264 = vmatprep.subr.mxu0 0.0
    %265 = vmatpush2.msra.mxu0 0.0
    %266 = vmatprep.subr.mxu0 0.0
    %267 = vmatpush2.msra.mxu0 0.0
    %268 = vmatprep.mubr.f32.mxu0 0.0
    %269 = vmatmul.mubr.f32.gmra.mxu0 %v199
    %v270 = vpop.f32.mrf.mxu0
    %v271 = vadd.f32 %v186, %v270
    %v272 = vpop.f32.mrf.mxu0
    %v273 = vadd.f32 %v190, %v272
    %274 = vmatprep.mubr.f32.mxu0 0.0
    %275 = vmatmul.mubr.f32.gmra.mxu0 %v202
    %v276 = vpop.f32.mrf.mxu0
    %v277 = vadd.f32 %v186, %v276
    %v278 = vpop.f32.mrf.mxu0
    %v279 = vadd.f32 %v190, %v278
    %280 = vdwg.mxu0
    %281 = vmatprep.subr.mxu0 0.0
    %282 = vmatpush1.msra.mxu0 0.0
    %283 = vmatprep.subr.mxu0 0.0
    %284 = vmatpush1.msra.mxu0 0.0
    %285 = vmatprep.subr.mxu0 0.0
    %286 = vmatpush1.msra.mxu0 0.0
    %287 = vmatprep.subr.mxu0 0.0
    %288 = vmatpush1.msra.mxu0 0.0
    %289 = vmatprep.subr.mxu0 0.0
    %290 = vmatpush1.msra.mxu0 0.0
    %291 = vmatprep.subr.mxu0 0.0
    %292 = vmatpush1.msra.mxu0 0.0
    %293 = vmatprep.subr.mxu0 0.0
    %294 = vmatpush1.msra.mxu0 0.0
    %295 = vmatprep.subr.mxu0 0.0
    %296 = vmatpush1.msra.mxu0 0.0
    %297 = vmatprep.subr.mxu0 0.0
    %298 = vmatpush1.msra.mxu0 0.0
    %299 = vmatprep.subr.mxu0 0.0
    %300 = vmatpush1.msra.mxu0 0.0
    %301 = vmatprep.subr.mxu0 0.0
    %302 = vmatpush1.msra.mxu0 0.0
    %303 = vmatprep.subr.mxu0 0.0
    %304 = vmatpush1.msra.mxu0 0.0
    %305 = vmatprep.subr.mxu0 0.0
    %306 = vmatpush1.msra.mxu0 %v180
    %307 = vmatprep.subr.mxu0 0.0
    %308 = vmatpush1.msra.mxu0 %v177
    %309 = vmatprep.subr.mxu0 0.0
    %310 = vmatpush1.msra.mxu0 %v174
    %311 = vmatprep.subr.mxu0 0.0
    %312 = vmatpush1.msra.mxu0 %v171
    %313 = vmatprep.subr.mxu0 0.0
    %314 = vmatpush2.msra.mxu0 0.0
    %315 = vmatprep.subr.mxu0 0.0
    %316 = vmatpush2.msra.mxu0 0.0
    %317 = vmatprep.subr.mxu0 0.0
    %318 = vmatpush2.msra.mxu0 0.0
    %319 = vmatprep.subr.mxu0 0.0
    %320 = vmatpush2.msra.mxu0 0.0
    %321 = vmatprep.subr.mxu0 0.0
    %322 = vmatpush2.msra.mxu0 0.0
    %323 = vmatprep.subr.mxu0 0.0
    %324 = vmatpush2.msra.mxu0 0.0
    %325 = vmatprep.subr.mxu0 0.0
    %326 = vmatpush2.msra.mxu0 0.0
    %327 = vmatprep.subr.mxu0 0.0
    %328 = vmatpush2.msra.mxu0 0.0
    %329 = vmatprep.subr.mxu0 0.0
    %330 = vmatpush2.msra.mxu0 0.0
    %331 = vmatprep.subr.mxu0 0.0
    %332 = vmatpush2.msra.mxu0 0.0
    %333 = vmatprep.subr.mxu0 0.0
    %334 = vmatpush2.msra.mxu0 0.0
    %335 = vmatprep.subr.mxu0 0.0
    %336 = vmatpush2.msra.mxu0 0.0
    %337 = vmatprep.subr.mxu0 0.0
    %338 = vmatpush2.msra.mxu0 0.0
    %339 = vmatprep.subr.mxu0 0.0
    %340 = vmatpush2.msra.mxu0 0.0
    %341 = vmatprep.subr.mxu0 0.0
    %342 = vmatpush2.msra.mxu0 0.0
    %343 = vmatprep.subr.mxu0 0.0
    %344 = vmatpush2.msra.mxu0 0.0
    %345 = vmatprep.mubr.f32.mxu0 0.0
    %346 = vmatmul.mubr.f32.gmra.mxu0 %v199
    %v347 = vpop.f32.mrf.mxu0
    %v348 = vadd.f32 %v194, %v347
    %v349 = vpop.f32.mrf.mxu0
    %350 = vmatprep.mubr.f32.mxu0 0.0
    %351 = vmatmul.mubr.f32.gmra.mxu0 %v202
    %v352 = vpop.f32.mrf.mxu0
    %v353 = vadd.f32 %v194, %v352
    %v354 = vpop.f32.mrf.mxu0
    %355 = vdwg.mxu0
    %v356 = vmax.f32 %v348, 0.0
    %v357 = vmax.f32 %v353, 0.0
    %v360 = vunpack.c.l.s4 1966171168
    %v361 = vunpack.c.0.s8 %v360
    %v362 = vlaneseq
    %v363 = vshrl.u32 %v362, 7
    %v364 = vsub.s32 %v361, %v363
    %v365 = vrot.slane %v164, %v364
    %v366 = vcombine.high %v365, %v365
    %v368 = vunpack.c.l.s4 1966171168
    %v369 = vunpack.c.0.s8 %v368
    %v370 = vlaneseq
    %v371 = vshrl.u32 %v370, 7
    %v372 = vsub.s32 %v369, %v371
    %v373 = vrot.slane %v365, %v372
    %v375 = vunpack.c.l.s4 1966171168
    %v376 = vunpack.c.0.s8 %v375
    %v377 = vlaneseq
    %v378 = vshrl.u32 %v377, 7
    %v379 = vsub.s32 %v376, %v378
    %v380 = vrot.slane %v366, %v379
    %383 = vmatprep.subr.mxu0 0.0
    %384 = vmatpush1.xpose.msra.mxu0 0.0
    %385 = vmatprep.subr.mxu0 0.0
    %386 = vmatpush1.xpose.msra.mxu0 0.0
    %387 = vmatprep.subr.mxu0 0.0
    %388 = vmatpush1.xpose.msra.mxu0 0.0
    %389 = vmatprep.subr.mxu0 0.0
    %390 = vmatpush1.xpose.msra.mxu0 0.0
    %391 = vmatprep.subr.mxu0 0.0
    %392 = vmatpush1.xpose.msra.mxu0 0.0
    %393 = vmatprep.subr.mxu0 0.0
    %394 = vmatpush1.xpose.msra.mxu0 0.0
    %395 = vmatprep.subr.mxu0 0.0
    %396 = vmatpush1.xpose.msra.mxu0 0.0
    %397 = vmatprep.subr.mxu0 0.0
    %398 = vmatpush1.xpose.msra.mxu0 0.0
    %399 = vmatprep.subr.mxu0 0.0
    %400 = vmatpush1.xpose.msra.mxu0 0.0
    %401 = vmatprep.subr.mxu0 0.0
    %402 = vmatpush1.xpose.msra.mxu0 0.0
    %403 = vmatprep.subr.mxu0 0.0
    %404 = vmatpush1.xpose.msra.mxu0 0.0
    %405 = vmatprep.subr.mxu0 0.0
    %406 = vmatpush1.xpose.msra.mxu0 0.0
    %407 = vmatprep.subr.mxu0 0.0
    %408 = vmatpush1.xpose.msra.mxu0 0.0
    %409 = vmatprep.subr.mxu0 0.0
    %410 = vmatpush1.xpose.msra.mxu0 0.0
    %411 = vmatprep.subr.mxu0 0.0
    %412 = vmatpush1.xpose.msra.mxu0 0.0
    %413 = vmatprep.subr.mxu0 0.0
    %414 = vmatpush1.xpose.msra.mxu0 %v271
    %415 = vmatprep.subr.mxu0 0.0
    %416 = vmatpush2.xpose.msra.mxu0 0.0
    %417 = vmatprep.subr.mxu0 0.0
    %418 = vmatpush2.xpose.msra.mxu0 0.0
    %419 = vmatprep.subr.mxu0 0.0
    %420 = vmatpush2.xpose.msra.mxu0 0.0
    %421 = vmatprep.subr.mxu0 0.0
    %422 = vmatpush2.xpose.msra.mxu0 0.0
    %423 = vmatprep.subr.mxu0 0.0
    %424 = vmatpush2.xpose.msra.mxu0 0.0
    %425 = vmatprep.subr.mxu0 0.0
    %426 = vmatpush2.xpose.msra.mxu0 0.0
    %427 = vmatprep.subr.mxu0 0.0
    %428 = vmatpush2.xpose.msra.mxu0 0.0
    %429 = vmatprep.subr.mxu0 0.0
    %430 = vmatpush2.xpose.msra.mxu0 0.0
    %431 = vmatprep.subr.mxu0 0.0
    %432 = vmatpush2.xpose.msra.mxu0 0.0
    %433 = vmatprep.subr.mxu0 0.0
    %434 = vmatpush2.xpose.msra.mxu0 0.0
    %435 = vmatprep.subr.mxu0 0.0
    %436 = vmatpush2.xpose.msra.mxu0 0.0
    %437 = vmatprep.subr.mxu0 0.0
    %438 = vmatpush2.xpose.msra.mxu0 0.0
    %439 = vmatprep.subr.mxu0 0.0
    %440 = vmatpush2.xpose.msra.mxu0 0.0
    %441 = vmatprep.subr.mxu0 0.0
    %442 = vmatpush2.xpose.msra.mxu0 0.0
    %443 = vmatprep.subr.mxu0 0.0
    %444 = vmatpush2.xpose.msra.mxu0 0.0
    %445 = vmatprep.subr.mxu0 0.0
    %446 = vmatpush2.xpose.msra.mxu0 0.0
    %447 = vmatprep.mubr.f32.mxu0 0.0
    %448 = vmatmul.mubr.f32.gmra.mxu0 %v373
    %v449 = vpop.f32.mrf.mxu0
    %v450 = vadd.f32 0.0, %v449
    %v451 = vpop.f32.mrf.mxu0
    %452 = vdwg.mxu0
    %453 = vmatprep.subr.mxu0 0.0
    %454 = vmatpush1.xpose.msra.mxu0 0.0
    %455 = vmatprep.subr.mxu0 0.0
    %456 = vmatpush1.xpose.msra.mxu0 0.0
    %457 = vmatprep.subr.mxu0 0.0
    %458 = vmatpush1.xpose.msra.mxu0 0.0
    %459 = vmatprep.subr.mxu0 0.0
    %460 = vmatpush1.xpose.msra.mxu0 0.0
    %461 = vmatprep.subr.mxu0 0.0
    %462 = vmatpush1.xpose.msra.mxu0 0.0
    %463 = vmatprep.subr.mxu0 0.0
    %464 = vmatpush1.xpose.msra.mxu0 0.0
    %465 = vmatprep.subr.mxu0 0.0
    %466 = vmatpush1.xpose.msra.mxu0 0.0
    %467 = vmatprep.subr.mxu0 0.0
    %468 = vmatpush1.xpose.msra.mxu0 0.0
    %469 = vmatprep.subr.mxu0 0.0
    %470 = vmatpush1.xpose.msra.mxu0 0.0
    %471 = vmatprep.subr.mxu0 0.0
    %472 = vmatpush1.xpose.msra.mxu0 0.0
    %473 = vmatprep.subr.mxu0 0.0
    %474 = vmatpush1.xpose.msra.mxu0 0.0
    %475 = vmatprep.subr.mxu0 0.0
    %476 = vmatpush1.xpose.msra.mxu0 0.0
    %477 = vmatprep.subr.mxu0 0.0
    %478 = vmatpush1.xpose.msra.mxu0 0.0
    %479 = vmatprep.subr.mxu0 0.0
    %480 = vmatpush1.xpose.msra.mxu0 0.0
    %481 = vmatprep.subr.mxu0 0.0
    %482 = vmatpush1.xpose.msra.mxu0 0.0
    %483 = vmatprep.subr.mxu0 0.0
    %484 = vmatpush1.xpose.msra.mxu0 %v277
    %485 = vmatprep.subr.mxu0 0.0
    %486 = vmatpush2.xpose.msra.mxu0 0.0
    %487 = vmatprep.subr.mxu0 0.0
    %488 = vmatpush2.xpose.msra.mxu0 0.0
    %489 = vmatprep.subr.mxu0 0.0
    %490 = vmatpush2.xpose.msra.mxu0 0.0
    %491 = vmatprep.subr.mxu0 0.0
    %492 = vmatpush2.xpose.msra.mxu0 0.0
    %493 = vmatprep.subr.mxu0 0.0
    %494 = vmatpush2.xpose.msra.mxu0 0.0
    %495 = vmatprep.subr.mxu0 0.0
    %496 = vmatpush2.xpose.msra.mxu0 0.0
    %497 = vmatprep.subr.mxu0 0.0
    %498 = vmatpush2.xpose.msra.mxu0 0.0
    %499 = vmatprep.subr.mxu0 0.0
    %500 = vmatpush2.xpose.msra.mxu0 0.0
    %501 = vmatprep.subr.mxu0 0.0
    %502 = vmatpush2.xpose.msra.mxu0 0.0
    %503 = vmatprep.subr.mxu0 0.0
    %504 = vmatpush2.xpose.msra.mxu0 0.0
    %505 = vmatprep.subr.mxu0 0.0
    %506 = vmatpush2.xpose.msra.mxu0 0.0
    %507 = vmatprep.subr.mxu0 0.0
    %508 = vmatpush2.xpose.msra.mxu0 0.0
    %509 = vmatprep.subr.mxu0 0.0
    %510 = vmatpush2.xpose.msra.mxu0 0.0
    %511 = vmatprep.subr.mxu0 0.0
    %512 = vmatpush2.xpose.msra.mxu0 0.0
    %513 = vmatprep.subr.mxu0 0.0
    %514 = vmatpush2.xpose.msra.mxu0 0.0
    %515 = vmatprep.subr.mxu0 0.0
    %516 = vmatpush2.xpose.msra.mxu0 0.0
    %517 = vmatprep.mubr.f32.mxu0 0.0
    %518 = vmatmul.mubr.f32.gmra.mxu0 %v380
    %v519 = vpop.f32.mrf.mxu0
    %v520 = vadd.f32 0.0, %v519
    %v521 = vpop.f32.mrf.mxu0
    %522 = vdwg.mxu0
    %v525 = vrot.slane %v520, 7
    %vm526 = vcmask 1041409
    %v527 = vsel %vm526, %v525, %v450
    %vm529 = vcmask 58368
    %v530 = vsel %vm529, %v527, -inf
    %531 = vmax.xlane.f32.xlu0 %v530
    %v532 = vpop.xlane.xlu0 %531
    %v534 = vrot.slane %v532, 1
    %v537 = vsub.f32 %v450, %v532
    %v538 = vsub.f32 %v520, %v534
    %v539 = vmul.f32 %v537, 1.442695
    %v540 = vpow.pop %v539
    %v541 = vmul.f32 %v538, 1.442695
    %v542 = vpow.pop %v541
    %v545 = vrot.slane %v542, 7
    %v546 = vsel %vm526, %v545, %v540
    %v548 = vsel %vm529, %v546, 0.0
    %549 = vadd.xlane.f32.xlu0 %v548
    %v550 = vpop.xlane.xlu0 %549
    %v552 = vrot.slane %v550, 1
    %v555 = vrcp.pop %v550
    %v556 = vmul.f32 %v540, %v555
    %v557 = vrcp.pop %v552
    %v558 = vmul.f32 %v542, %v557
    %v559 = vld [vmem:[%s6] sm:$0xff]
    %v560 = vld [vmem:[%s6 + $0x8] sm:$0xff]
    %v561 = vld [vmem:[%s6 + $0x10] sm:$0xff]
    %v562 = vld [vmem:[%s6 + $0x18] sm:$0xff]
    %v563 = vld [vmem:[%s6 + $0x20] sm:$0xff]
    %v564 = vld [vmem:[%s6 + $0x28] sm:$0xff]
    %v565 = vld [vmem:[%s6 + $0x30] sm:$0xff]
    %v566 = vld [vmem:[%s6 + $0x38] sm:$0xff]
    %v567 = vld [vmem:[%s6 + $0x40] sm:$0xff]
    %v568 = vld [vmem:[%s6 + $0x48] sm:$0xff]
    %v569 = vld [vmem:[%s6 + $0x50] sm:$0xff]
    %v570 = vld [vmem:[%s6 + $0x58] sm:$0xff]
    %v571 = vld [vmem:[%s6 + $0x60] sm:$0xff]
    %v572 = vld [vmem:[%s6 + $0x68] sm:$0xff]
    %v573 = vld [vmem:[%s6 + $0x70] sm:$0xff]
    %v574 = vld [vmem:[%s6 + $0x78] sm:$0xff]
    %575 = vmatprep.subr.mxu0 0.0
    %576 = vmatpush1.msra.mxu0 %v574
    %577 = vmatprep.subr.mxu0 0.0
    %578 = vmatpush1.msra.mxu0 %v573
    %579 = vmatprep.subr.mxu0 0.0
    %580 = vmatpush1.msra.mxu0 %v572
    %581 = vmatprep.subr.mxu0 0.0
    %582 = vmatpush1.msra.mxu0 %v571
    %583 = vmatprep.subr.mxu0 0.0
    %584 = vmatpush1.msra.mxu0 %v570
    %585 = vmatprep.subr.mxu0 0.0
    %586 = vmatpush1.msra.mxu0 %v569
    %587 = vmatprep.subr.mxu0 0.0
    %588 = vmatpush1.msra.mxu0 %v568
    %589 = vmatprep.subr.mxu0 0.0
    %590 = vmatpush1.msra.mxu0 %v567
    %591 = vmatprep.subr.mxu0 0.0
    %592 = vmatpush1.msra.mxu0 %v566
    %593 = vmatprep.subr.mxu0 0.0
    %594 = vmatpush1.msra.mxu0 %v565
    %595 = vmatprep.subr.mxu0 0.0
    %596 = vmatpush1.msra.mxu0 %v564
    %597 = vmatprep.subr.mxu0 0.0
    %598 = vmatpush1.msra.mxu0 %v563
    %599 = vmatprep.subr.mxu0 0.0
    %600 = vmatpush1.msra.mxu0 %v562
    %601 = vmatprep.subr.mxu0 0.0
    %602 = vmatpush1.msra.mxu0 %v561
    %603 = vmatprep.subr.mxu0 0.0
    %604 = vmatpush1.msra.mxu0 %v560
    %605 = vmatprep.subr.mxu0 0.0
    %606 = vmatpush1.msra.mxu0 %v559
    %607 = vmatprep.subr.mxu0 0.0
    %608 = vmatpush2.msra.mxu0 0.0
    %609 = vmatprep.subr.mxu0 0.0
    %610 = vmatpush2.msra.mxu0 0.0
    %611 = vmatprep.subr.mxu0 0.0
    %612 = vmatpush2.msra.mxu0 0.0
    %613 = vmatprep.subr.mxu0 0.0
    %614 = vmatpush2.msra.mxu0 0.0
    %615 = vmatprep.subr.mxu0 0.0
    %616 = vmatpush2.msra.mxu0 0.0
    %617 = vmatprep.subr.mxu0 0.0
    %618 = vmatpush2.msra.mxu0 0.0
    %619 = vmatprep.subr.mxu0 0.0
    %620 = vmatpush2.msra.mxu0 0.0
    %621 = vmatprep.subr.mxu0 0.0
    %622 = vmatpush2.msra.mxu0 0.0
    %623 = vmatprep.subr.mxu0 0.0
    %624 = vmatpush2.msra.mxu0 0.0
    %625 = vmatprep.subr.mxu0 0.0
    %626 = vmatpush2.msra.mxu0 0.0
    %627 = vmatprep.subr.mxu0 0.0
    %628 = vmatpush2.msra.mxu0 0.0
    %629 = vmatprep.subr.mxu0 0.0
    %630 = vmatpush2.msra.mxu0 0.0
    %631 = vmatprep.subr.mxu0 0.0
    %632 = vmatpush2.msra.mxu0 0.0
    %633 = vmatprep.subr.mxu0 0.0
    %634 = vmatpush2.msra.mxu0 0.0
    %635 = vmatprep.subr.mxu0 0.0
    %636 = vmatpush2.msra.mxu0 0.0
    %637 = vmatprep.subr.mxu0 0.0
    %638 = vmatpush2.msra.mxu0 0.0
    %639 = vmatprep.mubr.f32.mxu0 0.0
    %640 = vmatmul.mubr.f32.gmra.mxu0 %v356
    %v641 = vpop.f32.mrf.mxu0
    %v642 = vadd.f32 0.0, %v641
    %v643 = vpop.f32.mrf.mxu0
    %644 = vmatprep.mubr.f32.mxu0 0.0
    %645 = vmatmul.mubr.f32.gmra.mxu0 %v357
    %v646 = vpop.f32.mrf.mxu0
    %v647 = vadd.f32 0.0, %v646
    %v648 = vpop.f32.mrf.mxu0
    %649 = vdwg.mxu0
    %s650 = sld [smem:[#allocation2]]
    %v651 = vstv %s650
    %v652 = vadd.f32 %v642, %v651
    %v653 = vadd.f32 %v647, %v651
    %v654 = vxor.u32 %v652, 2147483648
    %v655 = vxor.u32 %v653, 2147483648
    %v656 = vmul.f32 %v654, 1.442695
    %v657 = vpow.pop %v656
    %v658 = vmul.f32 %v655, 1.442695
    %v659 = vpow.pop %v658
    %v660 = vadd.f32 %v657, 1.0
    %v661 = vadd.f32 %v659, 1.0
    %v662 = vrcp.pop %v660
    %v663 = vmul.f32 1.0, %v662
    %v664 = vrcp.pop %v661
    %v665 = vmul.f32 1.0, %v664
    %668 = vset.pattern.permute.xlu0 0
    %669 = vperm.xlu0 %668, %v663
    %v670 = vpop.permute.xlu0 %669
    %671 = vset.pattern.permute.xlu0 0
    %672 = vperm.xlu0 %671, %v665
    %v673 = vpop.permute.xlu0 %672
    %v674 = vlaneseq
    %v675 = vand.u32 %v674, 127
    %v676 = vlaneseq
    %v677 = vshrl.u32 %v676, 7
    %v678 = vsub.s32 %v675, %v677
    %v679 = vrot.slane %v670, %v678
    %v680 = vlaneseq
    %v681 = vshrl.u32 %v680, 7
    %v682 = vsub.s32 %v675, %v681
    %v683 = vrot.slane %v673, %v682
    %v686 = vmul.f32 %v556, %v679
    %v687 = vmul.f32 %v558, %v683
    %v690 = vrot.slane %v687, 7
    %v691 = vsel %vm526, %v690, %v686
    %v693 = vsel %vm529, %v691, 0.0
    %694 = vadd.xlane.f32.xlu0 %v693
    %v695 = vpop.xlane.xlu0 %694
    %v696 = vadd.f32 %v695, 1e-08
    %v698 = vrot.slane %v696, 1
    %v701 = vrcp.pop %v696
    %v702 = vmul.f32 %v686, %v701
    %v703 = vrcp.pop %v698
    %v704 = vmul.f32 %v687, %v703
    %vm705 = vcmask 64512
    %v707 = vsel %vm705, %v702, 0
    %709 = vmatprep.subr.mxu0 0.0
    %710 = vmatpush1.msra.mxu0 0.0
    %711 = vmatprep.subr.mxu0 0.0
    %712 = vmatpush1.msra.mxu0 0.0
    %713 = vmatprep.subr.mxu0 0.0
    %714 = vmatpush1.msra.mxu0 0.0
    %715 = vmatprep.subr.mxu0 0.0
    %716 = vmatpush1.msra.mxu0 0.0
    %717 = vmatprep.subr.mxu0 0.0
    %718 = vmatpush1.msra.mxu0 0.0
    %719 = vmatprep.subr.mxu0 0.0
    %720 = vmatpush1.msra.mxu0 0.0
    %721 = vmatprep.subr.mxu0 0.0
    %722 = vmatpush1.msra.mxu0 0.0
    %723 = vmatprep.subr.mxu0 0.0
    %724 = vmatpush1.msra.mxu0 0.0
    %725 = vmatprep.subr.mxu0 0.0
    %726 = vmatpush1.msra.mxu0 0.0
    %727 = vmatprep.subr.mxu0 0.0
    %728 = vmatpush1.msra.mxu0 0.0
    %729 = vmatprep.subr.mxu0 0.0
    %730 = vmatpush1.msra.mxu0 0.0
    %731 = vmatprep.subr.mxu0 0.0
    %732 = vmatpush1.msra.mxu0 0.0
    %733 = vmatprep.subr.mxu0 0.0
    %734 = vmatpush1.msra.mxu0 0.0
    %735 = vmatprep.subr.mxu0 0.0
    %736 = vmatpush1.msra.mxu0 0.0
    %737 = vmatprep.subr.mxu0 0.0
    %738 = vmatpush1.msra.mxu0 0.0
    %739 = vmatprep.subr.mxu0 0.0
    %740 = vmatpush1.msra.mxu0 %v273
    %741 = vmatprep.subr.mxu0 0.0
    %742 = vmatpush2.msra.mxu0 0.0
    %743 = vmatprep.subr.mxu0 0.0
    %744 = vmatpush2.msra.mxu0 0.0
    %745 = vmatprep.subr.mxu0 0.0
    %746 = vmatpush2.msra.mxu0 0.0
    %747 = vmatprep.subr.mxu0 0.0
    %748 = vmatpush2.msra.mxu0 0.0
    %749 = vmatprep.subr.mxu0 0.0
    %750 = vmatpush2.msra.mxu0 0.0
    %751 = vmatprep.subr.mxu0 0.0
    %752 = vmatpush2.msra.mxu0 0.0
    %753 = vmatprep.subr.mxu0 0.0
    %754 = vmatpush2.msra.mxu0 0.0
    %755 = vmatprep.subr.mxu0 0.0
    %756 = vmatpush2.msra.mxu0 0.0
    %757 = vmatprep.subr.mxu0 0.0
    %758 = vmatpush2.msra.mxu0 0.0
    %759 = vmatprep.subr.mxu0 0.0
    %760 = vmatpush2.msra.mxu0 0.0
    %761 = vmatprep.subr.mxu0 0.0
    %762 = vmatpush2.msra.mxu0 0.0
    %763 = vmatprep.subr.mxu0 0.0
    %764 = vmatpush2.msra.mxu0 0.0
    %765 = vmatprep.subr.mxu0 0.0
    %766 = vmatpush2.msra.mxu0 0.0
    %767 = vmatprep.subr.mxu0 0.0
    %768 = vmatpush2.msra.mxu0 0.0
    %769 = vmatprep.subr.mxu0 0.0
    %770 = vmatpush2.msra.mxu0 0.0
    %771 = vmatprep.subr.mxu0 0.0
    %772 = vmatpush2.msra.mxu0 0.0
    %773 = vmatprep.mubr.f32.mxu0 0.0
    %774 = vmatmul.mubr.f32.gmra.mxu0 %v707
    %v775 = vpop.f32.mrf.mxu0
    %v776 = vadd.f32 0.0, %v775
    %v777 = vpop.f32.mrf.mxu0
    %778 = vdwg.mxu0
    %v780 = vsel %vm705, %v704, 0
    %782 = vmatprep.subr.mxu0 0.0
    %783 = vmatpush1.msra.mxu0 0.0
    %784 = vmatprep.subr.mxu0 0.0
    %785 = vmatpush1.msra.mxu0 0.0
    %786 = vmatprep.subr.mxu0 0.0
    %787 = vmatpush1.msra.mxu0 0.0
    %788 = vmatprep.subr.mxu0 0.0
    %789 = vmatpush1.msra.mxu0 0.0
    %790 = vmatprep.subr.mxu0 0.0
    %791 = vmatpush1.msra.mxu0 0.0
    %792 = vmatprep.subr.mxu0 0.0
    %793 = vmatpush1.msra.mxu0 0.0
    %794 = vmatprep.subr.mxu0 0.0
    %795 = vmatpush1.msra.mxu0 0.0
    %796 = vmatprep.subr.mxu0 0.0
    %797 = vmatpush1.msra.mxu0 0.0
    %798 = vmatprep.subr.mxu0 0.0
    %799 = vmatpush1.msra.mxu0 0.0
    %800 = vmatprep.subr.mxu0 0.0
    %801 = vmatpush1.msra.mxu0 0.0
    %802 = vmatprep.subr.mxu0 0.0
    %803 = vmatpush1.msra.mxu0 0.0
    %804 = vmatprep.subr.mxu0 0.0
    %805 = vmatpush1.msra.mxu0 0.0
    %806 = vmatprep.subr.mxu0 0.0
    %807 = vmatpush1.msra.mxu0 0.0
    %808 = vmatprep.subr.mxu0 0.0
    %809 = vmatpush1.msra.mxu0 0.0
    %810 = vmatprep.subr.mxu0 0.0
    %811 = vmatpush1.msra.mxu0 0.0
    %812 = vmatprep.subr.mxu0 0.0
    %813 = vmatpush1.msra.mxu0 %v279
    %814 = vmatprep.subr.mxu0 0.0
    %815 = vmatpush2.msra.mxu0 0.0
    %816 = vmatprep.subr.mxu0 0.0
    %817 = vmatpush2.msra.mxu0 0.0
    %818 = vmatprep.subr.mxu0 0.0
    %819 = vmatpush2.msra.mxu0 0.0
    %820 = vmatprep.subr.mxu0 0.0
    %821 = vmatpush2.msra.mxu0 0.0
    %822 = vmatprep.subr.mxu0 0.0
    %823 = vmatpush2.msra.mxu0 0.0
    %824 = vmatprep.subr.mxu0 0.0
    %825 = vmatpush2.msra.mxu0 0.0
    %826 = vmatprep.subr.mxu0 0.0
    %827 = vmatpush2.msra.mxu0 0.0
    %828 = vmatprep.subr.mxu0 0.0
    %829 = vmatpush2.msra.mxu0 0.0
    %830 = vmatprep.subr.mxu0 0.0
    %831 = vmatpush2.msra.mxu0 0.0
    %832 = vmatprep.subr.mxu0 0.0
    %833 = vmatpush2.msra.mxu0 0.0
    %834 = vmatprep.subr.mxu0 0.0
    %835 = vmatpush2.msra.mxu0 0.0
    %836 = vmatprep.subr.mxu0 0.0
    %837 = vmatpush2.msra.mxu0 0.0
    %838 = vmatprep.subr.mxu0 0.0
    %839 = vmatpush2.msra.mxu0 0.0
    %840 = vmatprep.subr.mxu0 0.0
    %841 = vmatpush2.msra.mxu0 0.0
    %842 = vmatprep.subr.mxu0 0.0
    %843 = vmatpush2.msra.mxu0 0.0
    %844 = vmatprep.subr.mxu0 0.0
    %845 = vmatpush2.msra.mxu0 0.0
    %846 = vmatprep.mubr.f32.mxu0 0.0
    %847 = vmatmul.mubr.f32.gmra.mxu0 %v780
    %v848 = vpop.f32.mrf.mxu0
    %v849 = vadd.f32 0.0, %v848
    %v850 = vpop.f32.mrf.mxu0
    %851 = vdwg.mxu0
    %v852 = vld [vmem:[%s8] sm:$0xff]
    %v853 = vld [vmem:[%s8 + $0x8] sm:$0xff]
    %v854 = vld [vmem:[%s8 + $0x10] sm:$0xff]
    %v855 = vld [vmem:[%s8 + $0x18] sm:$0xff]
    %v856 = vld [vmem:[%s8 + $0x20] sm:$0xff]
    %v857 = vld [vmem:[%s8 + $0x28] sm:$0xff]
    %v858 = vld [vmem:[%s8 + $0x30] sm:$0xff]
    %v859 = vld [vmem:[%s8 + $0x38] sm:$0xff]
    %v860 = vld [vmem:[%s8 + $0x40] sm:$0xff]
    %v861 = vld [vmem:[%s8 + $0x48] sm:$0xff]
    %v862 = vld [vmem:[%s8 + $0x50] sm:$0xff]
    %v863 = vld [vmem:[%s8 + $0x58] sm:$0xff]
    %v864 = vld [vmem:[%s8 + $0x60] sm:$0xff]
    %v865 = vld [vmem:[%s8 + $0x68] sm:$0xff]
    %v866 = vld [vmem:[%s8 + $0x70] sm:$0xff]
    %v867 = vld [vmem:[%s8 + $0x78] sm:$0xff]
    %v868 = vld [vmem:[%s9] sm:$0x1]
    %v870 = vlaneseq
    %v871 = vshrl.u32 %v870, 7
    %v872 = vsub.s32 0, %v871
    %v873 = vrot.slane %v868, %v872
    %v877 = vrot.slane %v849, 7
    %v878 = vsel %vm526, %v877, %v776
    %880 = vmatprep.subr.mxu0 0.0
    %881 = vmatpush1.msra.mxu0 %v867
    %882 = vmatprep.subr.mxu0 0.0
    %883 = vmatpush1.msra.mxu0 %v866
    %884 = vmatprep.subr.mxu0 0.0
    %885 = vmatpush1.msra.mxu0 %v865
    %886 = vmatprep.subr.mxu0 0.0
    %887 = vmatpush1.msra.mxu0 %v864
    %888 = vmatprep.subr.mxu0 0.0
    %889 = vmatpush1.msra.mxu0 %v863
    %890 = vmatprep.subr.mxu0 0.0
    %891 = vmatpush1.msra.mxu0 %v862
    %892 = vmatprep.subr.mxu0 0.0
    %893 = vmatpush1.msra.mxu0 %v861
    %894 = vmatprep.subr.mxu0 0.0
    %895 = vmatpush1.msra.mxu0 %v860
    %896 = vmatprep.subr.mxu0 0.0
    %897 = vmatpush1.msra.mxu0 %v859
    %898 = vmatprep.subr.mxu0 0.0
    %899 = vmatpush1.msra.mxu0 %v858
    %900 = vmatprep.subr.mxu0 0.0
    %901 = vmatpush1.msra.mxu0 %v857
    %902 = vmatprep.subr.mxu0 0.0
    %903 = vmatpush1.msra.mxu0 %v856
    %904 = vmatprep.subr.mxu0 0.0
    %905 = vmatpush1.msra.mxu0 %v855
    %906 = vmatprep.subr.mxu0 0.0
    %907 = vmatpush1.msra.mxu0 %v854
    %908 = vmatprep.subr.mxu0 0.0
    %909 = vmatpush1.msra.mxu0 %v853
    %910 = vmatprep.subr.mxu0 0.0
    %911 = vmatpush1.msra.mxu0 %v852
    %912 = vmatprep.subr.mxu0 0.0
    %913 = vmatpush2.msra.mxu0 0.0
    %914 = vmatprep.subr.mxu0 0.0
    %915 = vmatpush2.msra.mxu0 0.0
    %916 = vmatprep.subr.mxu0 0.0
    %917 = vmatpush2.msra.mxu0 0.0
    %918 = vmatprep.subr.mxu0 0.0
    %919 = vmatpush2.msra.mxu0 0.0
    %920 = vmatprep.subr.mxu0 0.0
    %921 = vmatpush2.msra.mxu0 0.0
    %922 = vmatprep.subr.mxu0 0.0
    %923 = vmatpush2.msra.mxu0 0.0
    %924 = vmatprep.subr.mxu0 0.0
    %925 = vmatpush2.msra.mxu0 0.0
    %926 = vmatprep.subr.mxu0 0.0
    %927 = vmatpush2.msra.mxu0 0.0
    %928 = vmatprep.subr.mxu0 0.0
    %929 = vmatpush2.msra.mxu0 0.0
    %930 = vmatprep.subr.mxu0 0.0
    %931 = vmatpush2.msra.mxu0 0.0
    %932 = vmatprep.subr.mxu0 0.0
    %933 = vmatpush2.msra.mxu0 0.0
    %934 = vmatprep.subr.mxu0 0.0
    %935 = vmatpush2.msra.mxu0 0.0
    %936 = vmatprep.subr.mxu0 0.0
    %937 = vmatpush2.msra.mxu0 0.0
    %938 = vmatprep.subr.mxu0 0.0
    %939 = vmatpush2.msra.mxu0 0.0
    %940 = vmatprep.subr.mxu0 0.0
    %941 = vmatpush2.msra.mxu0 0.0
    %942 = vmatprep.subr.mxu0 0.0
    %943 = vmatpush2.msra.mxu0 0.0
    %944 = vmatprep.mubr.f32.mxu0 0.0
    %945 = vmatmul.mubr.f32.gmra.mxu0 %v878
    %v946 = vpop.f32.mrf.mxu0
    %v947 = vadd.f32 %v873, %v946
    %v948 = vpop.f32.mrf.mxu0
    %949 = vdwg.mxu0
    %950 = vst [vmem:[#allocation9] sm:$0x3] %v947
    %v951 = vsel %vm526, %v683, %v679
    %953 = vst.msk [vmem:[#allocation10] sm:$0x3] %vm529, %v951
    // Predicated region
    $region54: #{tpu_custom_call.1} parent=1 // pred_check
      _
    $region55: #{tpu_custom_call.1} parent=1 // pred_check_branch
      %955 = sbr.rel (0) target = $region57
    $region56: #{tpu_custom_call.1} parent=1 // pred_region
      %s957 = ssub.s32 32, 32
      %958 = vsyncadd [#allocation5], %s957
      %s960 = sshll.u32 [#allocation9], 4
      %s961 = int_to_ptr.vmem [resolvable:$true] %s960
      %963 = dma.vmem_to_hbm [thread:$0]  %s961, 32, %s10, [#allocation5]
    $region57: #{tpu_custom_call.1} parent=1 // pred_fallthru
      _
    // Predicated region
    $region58: #{tpu_custom_call.1} parent=1 // pred_check
      _
    $region59: #{tpu_custom_call.1} parent=1 // pred_check_branch
      %965 = sbr.rel (0) target = $region61
    $region60: #{tpu_custom_call.1} parent=1 // pred_region
      %s967 = ssub.s32 32, 32
      %968 = vsyncadd [#allocation11], %s967
      %s970 = sshll.u32 [#allocation10], 4
      %s971 = int_to_ptr.vmem [resolvable:$true] %s970
      %973 = dma.vmem_to_hbm [thread:$0]  %s971, 32, %s11, [#allocation11]
    $region61: #{tpu_custom_call.1} parent=1 // pred_fallthru
      _
    // Predicated region
    $region62: #{tpu_custom_call.1} parent=1 // pred_check
      _
    $region63: #{tpu_custom_call.1} parent=1 // pred_check_branch
      %975 = sbr.rel (0) target = $region65
    $region64: #{tpu_custom_call.1} parent=1 // pred_region
      %976 = dma.done [#allocation5], 32
    $region65: #{tpu_custom_call.1} parent=1 // pred_fallthru
      _
    // Predicated region
    $region66: #{tpu_custom_call.1} parent=1 // pred_check
      _
    $region67: #{tpu_custom_call.1} parent=1 // pred_check_branch
      %978 = sbr.rel (0) target = $region69
    $region68: #{tpu_custom_call.1} parent=1 // pred_region
      %979 = dma.done [#allocation11], 32
    $region69: #{tpu_custom_call.1} parent=1 // pred_fallthru
      _
    %980 = vsyncpa [#allocation4], 1
    %981 = vsyncpa [#allocation7], 1
    %982 = vsyncpa [#allocation5], 1
    %983 = vsyncpa [#allocation11], 1

// kernel: tpu_custom_call.1
$region0: #{tpu_custom_call.1}
  #allocation0 [shape = 'u32[]', space=smem, size = 0x4, offset = 0x4, fixed_abs, tag = 'smem constant byte address 0x4 - core index']
  #allocation1 [shape = 'u32[144,128]{1,0:T(1,128)}', space=vmem, size = 0x12000, scoped, tag = 'internal scratch']
  #allocation2 [shape = 'f32[1,1]{1,0:T(1,128)S(6)}', space=smem, size = 0x200, scoped, tag = 'scoped memory for tpu_custom_call.1']
  %s0 = inlined_call_operand.vmem [shape: f32[2,32], index: 0, kind: input, shape index: {}]
  %s1 = inlined_call_operand.hbm [shape: f32[16,32], index: 1, kind: input, shape index: {}]
  %s2 = inlined_call_operand.hbm [shape: f32[32,128], index: 2, kind: input, shape index: {}]
  %s3 = inlined_call_operand.vmem [shape: f32[1,128], index: 3, kind: input, shape index: {}]
  %s4 = inlined_call_operand.hbm [shape: f32[32,384], index: 4, kind: input, shape index: {}]
  %s5 = inlined_call_operand.vmem [shape: f32[1,384], index: 5, kind: input, shape index: {}]
  %s6 = inlined_call_operand.vmem [shape: f32[128,1], index: 6, kind: input, shape index: {}]
  %s7 = inlined_call_operand.<no memory space> [shape: f32[1,1], index: 7, kind: input, shape index: {}]
  %s8 = inlined_call_operand.vmem [shape: f32[128,128], index: 8, kind: input, shape index: {}]
  %s9 = inlined_call_operand.vmem [shape: f32[1,128], index: 9, kind: input, shape index: {}]
  %s10 = inlined_call_operand.hbm [shape: f32[2,128], index: 10, kind: output, shape index: {0}]
  %s11 = inlined_call_operand.hbm [shape: f32[2,8], index: 11, kind: output, shape index: {1}]
  %12 = xla_tuple %s10, %s11
  %s13 = sld [smem:[#allocation0]]
  $region70: #{tpu_custom_call.1} parent=0
    _
  %s15 = ssub.s32 1, %s13
  %s16 = scalar_select 0, %s15, %s13
  %17 = sst [smem:[#allocation2]] %s7
  $region1: #{tpu_custom_call.1} parent=0
    #allocation3 [shape = 'u8[8192]{0}', space=vmem, size = 0x2000, scoped, tag = 'input window, operand 1, single buffered']
    #allocation4 [shape = 's32[1]{0}', space=sflag, size = 0x4, scoped, tag = 'scoped memory for tpu_custom_call.1']
    #allocation5 [shape = 's32[1]{0}', space=sflag, size = 0x4, scoped, tag = 'scoped memory for tpu_custom_call.1']
    #allocation6 [shape = 'u8[16384]{0}', space=vmem, size = 0x4000, scoped, tag = 'input window, operand 2, single buffered']
    #allocation7 [shape = 's32[1]{0}', space=sflag, size = 0x4, scoped, tag = 'scoped memory for tpu_custom_call.1']
    #allocation8 [shape = 'u8[49152]{0}', space=vmem, size = 0xc000, scoped, tag = 'input window, operand 4, single buffered']
    #allocation9 [shape = 'u8[1024]{0}', space=vmem, size = 0x400, scoped, tag = 'output window, operand 0, single buffered']
    #allocation10 [shape = 'u8[1024]{0}', space=vmem, size = 0x400, scoped, tag = 'output window, operand 1, single buffered']
    #allocation11 [shape = 's32[1]{0}', space=sflag, size = 0x4, scoped, tag = 'scoped memory for tpu_custom_call.1']
    %18 = vsyncpa [#allocation4], 0
    %19 = vsyncpa [#allocation7], 0
    %20 = vsyncpa [#allocation5], 0
    %21 = vsyncpa [#allocation11], 0
    // Predicated region
    $region2: #{tpu_custom_call.1} parent=1 // pred_check
      _
    $region3: #{tpu_custom_call.1} parent=1 // pred_check_branch
      %23 = sbr.rel (0) target = $region5
    $region4: #{tpu_custom_call.1} parent=1 // pred_region
      _
    $region5: #{tpu_custom_call.1} parent=1 // pred_fallthru
      _
    // Predicated region
    $region6: #{tpu_custom_call.1} parent=1 // pred_check
      _
    $region7: #{tpu_custom_call.1} parent=1 // pred_check_branch
      %25 = sbr.rel (0) target = $region9
    $region8: #{tpu_custom_call.1} parent=1 // pred_region
      %s27 = ssub.s32 256, 256
      %28 = vsyncadd [#allocation4], %s27
      %s29 = sshll.u32 [#allocation3], 4
      %s30 = int_to_ptr.vmem [resolvable:$true] %s29
      %35 = dma.hbm_to_vmem [thread:$0]  %s1, 256, %s30, [#allocation4], 128, 128, 8
    $region9: #{tpu_custom_call.1} parent=1 // pred_fallthru
      _
    // Predicated region
    $region10: #{tpu_custom_call.1} parent=1 // pred_check
      _
    $region11: #{tpu_custom_call.1} parent=1 // pred_check_branch
      %37 = sbr.rel (0) target = $region13
    $region12: #{tpu_custom_call.1} parent=1 // pred_region
      %s39 = ssub.s32 512, 512
      %40 = vsyncadd [#allocation7], %s39
      %s41 = sshll.u32 [#allocation6], 4
      %s42 = int_to_ptr.vmem [resolvable:$true] %s41
      %47 = dma.hbm_to_vmem [thread:$0]  %s2, 512, %s42, [#allocation7], 128, 128, 8
    $region13: #{tpu_custom_call.1} parent=1 // pred_fallthru
      _
    // Predicated region
    $region14: #{tpu_custom_call.1} parent=1 // pred_check
      _
    $region15: #{tpu_custom_call.1} parent=1 // pred_check_branch
      %49 = sbr.rel (0) target = $region17
    $region16: #{tpu_custom_call.1} parent=1 // pred_region
      _
    $region17: #{tpu_custom_call.1} parent=1 // pred_fallthru
      _
    // Predicated region
    $region18: #{tpu_custom_call.1} parent=1 // pred_check
      _
    $region19: #{tpu_custom_call.1} parent=1 // pred_check_branch
      %51 = sbr.rel (0) target = $region21
    $region20: #{tpu_custom_call.1} parent=1 // pred_region
      %s53 = ssub.s32 1536, 1536
      %54 = vsyncadd [#allocation7], %s53
      %s55 = sshll.u32 [#allocation8], 4
      %s56 = int_to_ptr.vmem [resolvable:$true] %s55
      %61 = dma.hbm_to_vmem [thread:$0]  %s4, 1536, %s56, [#allocation7], 384, 384, 24
    $region21: #{tpu_custom_call.1} parent=1 // pred_fallthru
      _
    // Predicated region
    $region22: #{tpu_custom_call.1} parent=1 // pred_check
      _
    $region23: #{tpu_custom_call.1} parent=1 // pred_check_branch
      %63 = sbr.rel (0) target = $region25
    $region24: #{tpu_custom_call.1} parent=1 // pred_region
      _
    $region25: #{tpu_custom_call.1} parent=1 // pred_fallthru
      _
    // Predicated region
    $region26: #{tpu_custom_call.1} parent=1 // pred_check
      _
    $region27: #{tpu_custom_call.1} parent=1 // pred_check_branch
      %65 = sbr.rel (0) target = $region29
    $region28: #{tpu_custom_call.1} parent=1 // pred_region
      _
    $region29: #{tpu_custom_call.1} parent=1 // pred_fallthru
      _
    // Predicated region
    $region30: #{tpu_custom_call.1} parent=1 // pred_check
      _
    $region31: #{tpu_custom_call.1} parent=1 // pred_check_branch
      %67 = sbr.rel (0) target = $region33
    $region32: #{tpu_custom_call.1} parent=1 // pred_region
      _
    $region33: #{tpu_custom_call.1} parent=1 // pred_fallthru
      _
    // Predicated region
    $region34: #{tpu_custom_call.1} parent=1 // pred_check
      _
    $region35: #{tpu_custom_call.1} parent=1 // pred_check_branch
      %69 = sbr.rel (0) target = $region37
    $region36: #{tpu_custom_call.1} parent=1 // pred_region
      _
    $region37: #{tpu_custom_call.1} parent=1 // pred_fallthru
      _
    // Predicated region
    $region38: #{tpu_custom_call.1} parent=1 // pred_check
      _
    $region39: #{tpu_custom_call.1} parent=1 // pred_check_branch
      %71 = sbr.rel (0) target = $region41
    $region40: #{tpu_custom_call.1} parent=1 // pred_region
      _
    $region41: #{tpu_custom_call.1} parent=1 // pred_fallthru
      _
    // Predicated region
    $region42: #{tpu_custom_call.1} parent=1 // pred_check
      _
    $region43: #{tpu_custom_call.1} parent=1 // pred_check_branch
      %73 = sbr.rel (0) target = $region45
    $region44: #{tpu_custom_call.1} parent=1 // pred_region
      %74 = dma.done [#allocation4], 256
    $region45: #{tpu_custom_call.1} parent=1 // pred_fallthru
      _
    // Predicated region
    $region46: #{tpu_custom_call.1} parent=1 // pred_check
      _
    $region47: #{tpu_custom_call.1} parent=1 // pred_check_branch
      %76 = sbr.rel (0) target = $region49
    $region48: #{tpu_custom_call.1} parent=1 // pred_region
      %77 = dma.done [#allocation7], 512
    $region49: #{tpu_custom_call.1} parent=1 // pred_fallthru
      _
    // Predicated region
    $region50: #{tpu_custom_call.1} parent=1 // pred_check
      _
    $region51: #{tpu_custom_call.1} parent=1 // pred_check_branch
      %79 = sbr.rel (0) target = $region53
    $region52: #{tpu_custom_call.1} parent=1 // pred_region
      %80 = dma.done [#allocation7], 1536
    $region53: #{tpu_custom_call.1} parent=1 // pred_fallthru
      _
    %v81 = vld [vmem:[%s0] sm:$0x3]
    %v82 = vld [vmem:[#allocation6] sm:$0xff]
    %v83 = vld [vmem:[#allocation6 + $0x8] sm:$0xff]
    %v84 = vld [vmem:[#allocation6 + $0x10] sm:$0xff]
    %v85 = vld [vmem:[#allocation6 + $0x18] sm:$0xff]
    %v86 = vld [vmem:[%s3] sm:$0x1]
    %v88 = vlaneseq
    %v89 = vshrl.u32 %v88, 7
    %v90 = vsub.s32 0, %v89
    %v91 = vrot.slane %v86, %v90
    %vm93 = vcmask 261120
    %v95 = vsel %vm93, %v81, 0
    %97 = vmatprep.subr.mxu0 0.0
    %98 = vmatpush1.msra.mxu0 0.0
    %99 = vmatprep.subr.mxu0 0.0
    %100 = vmatpush1.msra.mxu0 0.0
    %101 = vmatprep.subr.mxu0 0.0
    %102 = vmatpush1.msra.mxu0 0.0
    %103 = vmatprep.subr.mxu0 0.0
    %104 = vmatpush1.msra.mxu0 0.0
    %105 = vmatprep.subr.mxu0 0.0
    %106 = vmatpush1.msra.mxu0 0.0
    %107 = vmatprep.subr.mxu0 0.0
    %108 = vmatpush1.msra.mxu0 0.0
    %109 = vmatprep.subr.mxu0 0.0
    %110 = vmatpush1.msra.mxu0 0.0
    %111 = vmatprep.subr.mxu0 0.0
    %112 = vmatpush1.msra.mxu0 0.0
    %113 = vmatprep.subr.mxu0 0.0
    %114 = vmatpush1.msra.mxu0 0.0
    %115 = vmatprep.subr.mxu0 0.0
    %116 = vmatpush1.msra.mxu0 0.0
    %117 = vmatprep.subr.mxu0 0.0
    %118 = vmatpush1.msra.mxu0 0.0
    %119 = vmatprep.subr.mxu0 0.0
    %120 = vmatpush1.msra.mxu0 0.0
    %121 = vmatprep.subr.mxu0 0.0
    %122 = vmatpush1.msra.mxu0 %v85
    %123 = vmatprep.subr.mxu0 0.0
    %124 = vmatpush1.msra.mxu0 %v84
    %125 = vmatprep.subr.mxu0 0.0
    %126 = vmatpush1.msra.mxu0 %v83
    %127 = vmatprep.subr.mxu0 0.0
    %128 = vmatpush1.msra.mxu0 %v82
    %129 = vmatprep.subr.mxu0 0.0
    %130 = vmatpush2.msra.mxu0 0.0
    %131 = vmatprep.subr.mxu0 0.0
    %132 = vmatpush2.msra.mxu0 0.0
    %133 = vmatprep.subr.mxu0 0.0
    %134 = vmatpush2.msra.mxu0 0.0
    %135 = vmatprep.subr.mxu0 0.0
    %136 = vmatpush2.msra.mxu0 0.0
    %137 = vmatprep.subr.mxu0 0.0
    %138 = vmatpush2.msra.mxu0 0.0
    %139 = vmatprep.subr.mxu0 0.0
    %140 = vmatpush2.msra.mxu0 0.0
    %141 = vmatprep.subr.mxu0 0.0
    %142 = vmatpush2.msra.mxu0 0.0
    %143 = vmatprep.subr.mxu0 0.0
    %144 = vmatpush2.msra.mxu0 0.0
    %145 = vmatprep.subr.mxu0 0.0
    %146 = vmatpush2.msra.mxu0 0.0
    %147 = vmatprep.subr.mxu0 0.0
    %148 = vmatpush2.msra.mxu0 0.0
    %149 = vmatprep.subr.mxu0 0.0
    %150 = vmatpush2.msra.mxu0 0.0
    %151 = vmatprep.subr.mxu0 0.0
    %152 = vmatpush2.msra.mxu0 0.0
    %153 = vmatprep.subr.mxu0 0.0
    %154 = vmatpush2.msra.mxu0 0.0
    %155 = vmatprep.subr.mxu0 0.0
    %156 = vmatpush2.msra.mxu0 0.0
    %157 = vmatprep.subr.mxu0 0.0
    %158 = vmatpush2.msra.mxu0 0.0
    %159 = vmatprep.subr.mxu0 0.0
    %160 = vmatpush2.msra.mxu0 0.0
    %161 = vmatprep.mubr.f32.mxu0 0.0
    %162 = vmatmul.mubr.f32.gmra.mxu0 %v95
    %v163 = vpop.f32.mrf.mxu0
    %v164 = vadd.f32 %v91, %v163
    %v165 = vpop.f32.mrf.mxu0
    %166 = vdwg.mxu0
    %v167 = vld [vmem:[#allocation3] sm:$0xff]
    %v168 = vld [vmem:[#allocation3 + $0x8] sm:$0xff]
    %v169 = vld [vmem:[#allocation8] sm:$0xff]
    %v170 = vld [vmem:[#allocation8 + $0x8] sm:$0xff]
    %v171 = vld [vmem:[#allocation8 + $0x10] sm:$0xff]
    %v172 = vld [vmem:[#allocation8 + $0x18] sm:$0xff]
    %v173 = vld [vmem:[#allocation8 + $0x20] sm:$0xff]
    %v174 = vld [vmem:[#allocation8 + $0x28] sm:$0xff]
    %v175 = vld [vmem:[#allocation8 + $0x30] sm:$0xff]
    %v176 = vld [vmem:[#allocation8 + $0x38] sm:$0xff]
    %v177 = vld [vmem:[#allocation8 + $0x40] sm:$0xff]
    %v178 = vld [vmem:[#allocation8 + $0x48] sm:$0xff]
    %v179 = vld [vmem:[#allocation8 + $0x50] sm:$0xff]
    %v180 = vld [vmem:[#allocation8 + $0x58] sm:$0xff]
    %v181 = vld [vmem:[%s5] sm:$0x7]
    %v183 = vlaneseq
    %v184 = vshrl.u32 %v183, 7
    %v185 = vsub.s32 0, %v184
    %v186 = vrot.slane %v181, %v185
    %v187 = vlaneseq
    %v188 = vshrl.u32 %v187, 7
    %v189 = vsub.s32 1, %v188
    %v190 = vrot.slane %v181, %v189
    %v191 = vlaneseq
    %v192 = vshrl.u32 %v191, 7
    %v193 = vsub.s32 2, %v192
    %v194 = vrot.slane %v181, %v193
    %v199 = vsel %vm93, %v167, 0
    %v202 = vsel %vm93, %v168, 0
    %204 = vmatprep.subr.mxu0 0.0
    %205 = vmatpush1.msra.mxu0 0.0
    %206 = vmatprep.subr.mxu0 0.0
    %207 = vmatpush1.msra.mxu0 0.0
    %208 = vmatprep.subr.mxu0 0.0
    %209 = vmatpush1.msra.mxu0 0.0
    %210 = vmatprep.subr.mxu0 0.0
    %211 = vmatpush1.msra.mxu0 0.0
    %212 = vmatprep.subr.mxu0 0.0
    %213 = vmatpush1.msra.mxu0 0.0
    %214 = vmatprep.subr.mxu0 0.0
    %215 = vmatpush1.msra.mxu0 0.0
    %216 = vmatprep.subr.mxu0 0.0
    %217 = vmatpush1.msra.mxu0 0.0
    %218 = vmatprep.subr.mxu0 0.0
    %219 = vmatpush1.msra.mxu0 0.0
    %220 = vmatprep.subr.mxu0 0.0
    %221 = vmatpush1.msra.mxu0 0.0
    %222 = vmatprep.subr.mxu0 0.0
    %223 = vmatpush1.msra.mxu0 0.0
    %224 = vmatprep.subr.mxu0 0.0
    %225 = vmatpush1.msra.mxu0 0.0
    %226 = vmatprep.subr.mxu0 0.0
    %227 = vmatpush1.msra.mxu0 0.0
    %228 = vmatprep.subr.mxu0 %v179
    %229 = vmatpush1.msra.mxu0 %v178
    %230 = vmatprep.subr.mxu0 %v176
    %231 = vmatpush1.msra.mxu0 %v175
    %232 = vmatprep.subr.mxu0 %v173
    %233 = vmatpush1.msra.mxu0 %v172
    %234 = vmatprep.subr.mxu0 %v170
    %235 = vmatpush1.msra.mxu0 %v169
    %236 = vmatprep.subr.mxu0 0.0
    %237 = vmatpush2.msra.mxu0 0.0
    %238 = vmatprep.subr.mxu0 0.0
    %239 = vmatpush2.msra.mxu0 0.0
    %240 = vmatprep.subr.mxu0 0.0
    %241 = vmatpush2.msra.mxu0 0.0
    %242 = vmatprep.subr.mxu0 0.0
    %243 = vmatpush2.msra.mxu0 0.0
    %244 = vmatprep.subr.mxu0 0.0
    %245 = vmatpush2.msra.mxu0 0.0
    %246 = vmatprep.subr.mxu0 0.0
    %247 = vmatpush2.msra.mxu0 0.0
    %248 = vmatprep.subr.mxu0 0.0
    %249 = vmatpush2.msra.mxu0 0.0
    %250 = vmatprep.subr.mxu0 0.0
    %251 = vmatpush2.msra.mxu0 0.0
    %252 = vmatprep.subr.mxu0 0.0
    %253 = vmatpush2.msra.mxu0 0.0
    %254 = vmatprep.subr.mxu0 0.0
    %255 = vmatpush2.msra.mxu0 0.0
    %256 = vmatprep.subr.mxu0 0.0
    %257 = vmatpush2.msra.mxu0 0.0
    %258 = vmatprep.subr.mxu0 0.0
    %259 = vmatpush2.msra.mxu0 0.0
    %260 = vmatprep.subr.mxu0 0.0
    %261 = vmatpush2.msra.mxu0 0.0
    %262 = vmatprep.subr.mxu0 0.0
    %263 = vmatpush2.msra.mxu0 0.0
    %264 = vmatprep.subr.mxu0 0.0
    %265 = vmatpush2.msra.mxu0 0.0
    %266 = vmatprep.subr.mxu0 0.0
    %267 = vmatpush2.msra.mxu0 0.0
    %268 = vmatprep.mubr.f32.mxu0 0.0
    %269 = vmatmul.mubr.f32.gmra.mxu0 %v199
    %v270 = vpop.f32.mrf.mxu0
    %v271 = vadd.f32 %v186, %v270
    %v272 = vpop.f32.mrf.mxu0
    %v273 = vadd.f32 %v190, %v272
    %274 = vmatprep.mubr.f32.mxu0 0.0
    %275 = vmatmul.mubr.f32.gmra.mxu0 %v202
    %v276 = vpop.f32.mrf.mxu0
    %v277 = vadd.f32 %v186, %v276
    %v278 = vpop.f32.mrf.mxu0
    %v279 = vadd.f32 %v190, %v278
    %280 = vdwg.mxu0
    %281 = vmatprep.subr.mxu0 0.0
    %282 = vmatpush1.msra.mxu0 0.0
    %283 = vmatprep.subr.mxu0 0.0
    %284 = vmatpush1.msra.mxu0 0.0
    %285 = vmatprep.subr.mxu0 0.0
    %286 = vmatpush1.msra.mxu0 0.0
    %287 = vmatprep.subr.mxu0 0.0
    %288 = vmatpush1.msra.mxu0 0.0
    %289 = vmatprep.subr.mxu0 0.0
    %290 = vmatpush1.msra.mxu0 0.0
    %291 = vmatprep.subr.mxu0 0.0
    %292 = vmatpush1.msra.mxu0 0.0
    %293 = vmatprep.subr.mxu0 0.0
    %294 = vmatpush1.msra.mxu0 0.0
    %295 = vmatprep.subr.mxu0 0.0
    %296 = vmatpush1.msra.mxu0 0.0
    %297 = vmatprep.subr.mxu0 0.0
    %298 = vmatpush1.msra.mxu0 0.0
    %299 = vmatprep.subr.mxu0 0.0
    %300 = vmatpush1.msra.mxu0 0.0
    %301 = vmatprep.subr.mxu0 0.0
    %302 = vmatpush1.msra.mxu0 0.0
    %303 = vmatprep.subr.mxu0 0.0
    %304 = vmatpush1.msra.mxu0 0.0
    %305 = vmatprep.subr.mxu0 0.0
    %306 = vmatpush1.msra.mxu0 %v180
    %307 = vmatprep.subr.mxu0 0.0
    %308 = vmatpush1.msra.mxu0 %v177
    %309 = vmatprep.subr.mxu0 0.0
    %310 = vmatpush1.msra.mxu0 %v174
    %311 = vmatprep.subr.mxu0 0.0
    %312 = vmatpush1.msra.mxu0 %v171
    %313 = vmatprep.subr.mxu0 0.0
    %314 = vmatpush2.msra.mxu0 0.0
    %315 = vmatprep.subr.mxu0 0.0
    %316 = vmatpush2.msra.mxu0 0.0
    %317 = vmatprep.subr.mxu0 0.0
    %318 = vmatpush2.msra.mxu0 0.0
    %319 = vmatprep.subr.mxu0 0.0
    %320 = vmatpush2.msra.mxu0 0.0
    %321 = vmatprep.subr.mxu0 0.0
    %322 = vmatpush2.msra.mxu0 0.0
    %323 = vmatprep.subr.mxu0 0.0
    %324 = vmatpush2.msra.mxu0 0.0
    %325 = vmatprep.subr.mxu0 0.0
    %326 = vmatpush2.msra.mxu0 0.0
    %327 = vmatprep.subr.mxu0 0.0
    %328 = vmatpush2.msra.mxu0 0.0
    %329 = vmatprep.subr.mxu0 0.0
    %330 = vmatpush2.msra.mxu0 0.0
    %331 = vmatprep.subr.mxu0 0.0
    %332 = vmatpush2.msra.mxu0 0.0
    %333 = vmatprep.subr.mxu0 0.0
    %334 = vmatpush2.msra.mxu0 0.0
    %335 = vmatprep.subr.mxu0 0.0
    %336 = vmatpush2.msra.mxu0 0.0
    %337 = vmatprep.subr.mxu0 0.0
    %338 = vmatpush2.msra.mxu0 0.0
    %339 = vmatprep.subr.mxu0 0.0
    %340 = vmatpush2.msra.mxu0 0.0
    %341 = vmatprep.subr.mxu0 0.0
    %342 = vmatpush2.msra.mxu0 0.0
    %343 = vmatprep.subr.mxu0 0.0
    %344 = vmatpush2.msra.mxu0 0.0
    %345 = vmatprep.mubr.f32.mxu0 0.0
    %346 = vmatmul.mubr.f32.gmra.mxu0 %v199
    %v347 = vpop.f32.mrf.mxu0
    %v348 = vadd.f32 %v194, %v347
    %v349 = vpop.f32.mrf.mxu0
    %350 = vmatprep.mubr.f32.mxu0 0.0
    %351 = vmatmul.mubr.f32.gmra.mxu0 %v202
    %v352 = vpop.f32.mrf.mxu0
    %v353 = vadd.f32 %v194, %v352
    %v354 = vpop.f32.mrf.mxu0
    %355 = vdwg.mxu0
    %v356 = vmax.f32 %v348, 0.0
    %v357 = vmax.f32 %v353, 0.0
    %v360 = vunpack.c.l.s4 1966171168
    %v361 = vunpack.c.0.s8 %v360
    %v362 = vlaneseq
    %v363 = vshrl.u32 %v362, 7
    %v364 = vsub.s32 %v361, %v363
    %v365 = vrot.slane %v164, %v364
    %v366 = vcombine.high %v365, %v365
    %v368 = vunpack.c.l.s4 1966171168
    %v369 = vunpack.c.0.s8 %v368
    %v370 = vlaneseq
    %v371 = vshrl.u32 %v370, 7
    %v372 = vsub.s32 %v369, %v371
    %v373 = vrot.slane %v365, %v372
    %v375 = vunpack.c.l.s4 1966171168
    %v376 = vunpack.c.0.s8 %v375
    %v377 = vlaneseq
    %v378 = vshrl.u32 %v377, 7
    %v379 = vsub.s32 %v376, %v378
    %v380 = vrot.slane %v366, %v379
    %383 = vmatprep.subr.mxu0 0.0
    %384 = vmatpush1.xpose.msra.mxu0 0.0
    %385 = vmatprep.subr.mxu0 0.0
    %386 = vmatpush1.xpose.msra.mxu0 0.0
    %387 = vmatprep.subr.mxu0 0.0
    %388 = vmatpush1.xpose.msra.mxu0 0.0
    %389 = vmatprep.subr.mxu0 0.0
    %390 = vmatpush1.xpose.msra.mxu0 0.0
    %391 = vmatprep.subr.mxu0 0.0
    %392 = vmatpush1.xpose.msra.mxu0 0.0
    %393 = vmatprep.subr.mxu0 0.0
    %394 = vmatpush1.xpose.msra.mxu0 0.0
    %395 = vmatprep.subr.mxu0 0.0
    %396 = vmatpush1.xpose.msra.mxu0 0.0
    %397 = vmatprep.subr.mxu0 0.0
    %398 = vmatpush1.xpose.msra.mxu0 0.0
    %399 = vmatprep.subr.mxu0 0.0
    %400 = vmatpush1.xpose.msra.mxu0 0.0
    %401 = vmatprep.subr.mxu0 0.0
    %402 = vmatpush1.xpose.msra.mxu0 0.0
    %403 = vmatprep.subr.mxu0 0.0
    %404 = vmatpush1.xpose.msra.mxu0 0.0
    %405 = vmatprep.subr.mxu0 0.0
    %406 = vmatpush1.xpose.msra.mxu0 0.0
    %407 = vmatprep.subr.mxu0 0.0
    %408 = vmatpush1.xpose.msra.mxu0 0.0
    %409 = vmatprep.subr.mxu0 0.0
    %410 = vmatpush1.xpose.msra.mxu0 0.0
    %411 = vmatprep.subr.mxu0 0.0
    %412 = vmatpush1.xpose.msra.mxu0 0.0
    %413 = vmatprep.subr.mxu0 0.0
    %414 = vmatpush1.xpose.msra.mxu0 %v271
    %415 = vmatprep.subr.mxu0 0.0
    %416 = vmatpush2.xpose.msra.mxu0 0.0
    %417 = vmatprep.subr.mxu0 0.0
    %418 = vmatpush2.xpose.msra.mxu0 0.0
    %419 = vmatprep.subr.mxu0 0.0
    %420 = vmatpush2.xpose.msra.mxu0 0.0
    %421 = vmatprep.subr.mxu0 0.0
    %422 = vmatpush2.xpose.msra.mxu0 0.0
    %423 = vmatprep.subr.mxu0 0.0
    %424 = vmatpush2.xpose.msra.mxu0 0.0
    %425 = vmatprep.subr.mxu0 0.0
    %426 = vmatpush2.xpose.msra.mxu0 0.0
    %427 = vmatprep.subr.mxu0 0.0
    %428 = vmatpush2.xpose.msra.mxu0 0.0
    %429 = vmatprep.subr.mxu0 0.0
    %430 = vmatpush2.xpose.msra.mxu0 0.0
    %431 = vmatprep.subr.mxu0 0.0
    %432 = vmatpush2.xpose.msra.mxu0 0.0
    %433 = vmatprep.subr.mxu0 0.0
    %434 = vmatpush2.xpose.msra.mxu0 0.0
    %435 = vmatprep.subr.mxu0 0.0
    %436 = vmatpush2.xpose.msra.mxu0 0.0
    %437 = vmatprep.subr.mxu0 0.0
    %438 = vmatpush2.xpose.msra.mxu0 0.0
    %439 = vmatprep.subr.mxu0 0.0
    %440 = vmatpush2.xpose.msra.mxu0 0.0
    %441 = vmatprep.subr.mxu0 0.0
    %442 = vmatpush2.xpose.msra.mxu0 0.0
    %443 = vmatprep.subr.mxu0 0.0
    %444 = vmatpush2.xpose.msra.mxu0 0.0
    %445 = vmatprep.subr.mxu0 0.0
    %446 = vmatpush2.xpose.msra.mxu0 0.0
    %447 = vmatprep.mubr.f32.mxu0 0.0
    %448 = vmatmul.mubr.f32.gmra.mxu0 %v373
    %v449 = vpop.f32.mrf.mxu0
    %v450 = vadd.f32 0.0, %v449
    %v451 = vpop.f32.mrf.mxu0
    %452 = vdwg.mxu0
    %453 = vmatprep.subr.mxu0 0.0
    %454 = vmatpush1.xpose.msra.mxu0 0.0
    %455 = vmatprep.subr.mxu0 0.0
    %456 = vmatpush1.xpose.msra.mxu0 0.0
    %457 = vmatprep.subr.mxu0 0.0
    %458 = vmatpush1.xpose.msra.mxu0 0.0
    %459 = vmatprep.subr.mxu0 0.0
    %460 = vmatpush1.xpose.msra.mxu0 0.0
    %461 = vmatprep.subr.mxu0 0.0
    %462 = vmatpush1.xpose.msra.mxu0 0.0
    %463 = vmatprep.subr.mxu0 0.0
    %464 = vmatpush1.xpose.msra.mxu0 0.0
    %465 = vmatprep.subr.mxu0 0.0
    %466 = vmatpush1.xpose.msra.mxu0 0.0
    %467 = vmatprep.subr.mxu0 0.0
    %468 = vmatpush1.xpose.msra.mxu0 0.0
    %469 = vmatprep.subr.mxu0 0.0
    %470 = vmatpush1.xpose.msra.mxu0 0.0
    %471 = vmatprep.subr.mxu0 0.0
    %472 = vmatpush1.xpose.msra.mxu0 0.0
    %473 = vmatprep.subr.mxu0 0.0
    %474 = vmatpush1.xpose.msra.mxu0 0.0
    %475 = vmatprep.subr.mxu0 0.0
    %476 = vmatpush1.xpose.msra.mxu0 0.0
    %477 = vmatprep.subr.mxu0 0.0
    %478 = vmatpush1.xpose.msra.mxu0 0.0
    %479 = vmatprep.subr.mxu0 0.0
    %480 = vmatpush1.xpose.msra.mxu0 0.0
    %481 = vmatprep.subr.mxu0 0.0
    %482 = vmatpush1.xpose.msra.mxu0 0.0
    %483 = vmatprep.subr.mxu0 0.0
    %484 = vmatpush1.xpose.msra.mxu0 %v277
    %485 = vmatprep.subr.mxu0 0.0
    %486 = vmatpush2.xpose.msra.mxu0 0.0
    %487 = vmatprep.subr.mxu0 0.0
    %488 = vmatpush2.xpose.msra.mxu0 0.0
    %489 = vmatprep.subr.mxu0 0.0
    %490 = vmatpush2.xpose.msra.mxu0 0.0
    %491 = vmatprep.subr.mxu0 0.0
    %492 = vmatpush2.xpose.msra.mxu0 0.0
    %493 = vmatprep.subr.mxu0 0.0
    %494 = vmatpush2.xpose.msra.mxu0 0.0
    %495 = vmatprep.subr.mxu0 0.0
    %496 = vmatpush2.xpose.msra.mxu0 0.0
    %497 = vmatprep.subr.mxu0 0.0
    %498 = vmatpush2.xpose.msra.mxu0 0.0
    %499 = vmatprep.subr.mxu0 0.0
    %500 = vmatpush2.xpose.msra.mxu0 0.0
    %501 = vmatprep.subr.mxu0 0.0
    %502 = vmatpush2.xpose.msra.mxu0 0.0
    %503 = vmatprep.subr.mxu0 0.0
    %504 = vmatpush2.xpose.msra.mxu0 0.0
    %505 = vmatprep.subr.mxu0 0.0
    %506 = vmatpush2.xpose.msra.mxu0 0.0
    %507 = vmatprep.subr.mxu0 0.0
    %508 = vmatpush2.xpose.msra.mxu0 0.0
    %509 = vmatprep.subr.mxu0 0.0
    %510 = vmatpush2.xpose.msra.mxu0 0.0
    %511 = vmatprep.subr.mxu0 0.0
    %512 = vmatpush2.xpose.msra.mxu0 0.0
    %513 = vmatprep.subr.mxu0 0.0
    %514 = vmatpush2.xpose.msra.mxu0 0.0
    %515 = vmatprep.subr.mxu0 0.0
    %516 = vmatpush2.xpose.msra.mxu0 0.0
    %517 = vmatprep.mubr.f32.mxu0 0.0
    %518 = vmatmul.mubr.f32.gmra.mxu0 %v380
    %v519 = vpop.f32.mrf.mxu0
    %v520 = vadd.f32 0.0, %v519
    %v521 = vpop.f32.mrf.mxu0
    %522 = vdwg.mxu0
    %v525 = vrot.slane %v520, 7
    %vm526 = vcmask 1041409
    %v527 = vsel %vm526, %v525, %v450
    %vm529 = vcmask 58368
    %v530 = vsel %vm529, %v527, -inf
    %531 = vmax.xlane.f32.xlu0 %v530
    %v532 = vpop.xlane.xlu0 %531
    %v534 = vrot.slane %v532, 1
    %v537 = vsub.f32 %v450, %v532
    %v538 = vsub.f32 %v520, %v534
    %v539 = vmul.f32 %v537, 1.442695
    %v540 = vpow.pop %v539
    %v541 = vmul.f32 %v538, 1.442695
    %v542 = vpow.pop %v541
    %v545 = vrot.slane %v542, 7
    %v546 = vsel %vm526, %v545, %v540
    %v548 = vsel %vm529, %v546, 0.0
    %549 = vadd.xlane.f32.xlu0 %v548
    %v550 = vpop.xlane.xlu0 %549
    %v552 = vrot.slane %v550, 1
    %v555 = vrcp.pop %v550
    %v556 = vmul.f32 %v540, %v555
    %v557 = vrcp.pop %v552
    %v558 = vmul.f32 %v542, %v557
    %v559 = vld [vmem:[%s6] sm:$0xff]
    %v560 = vld [vmem:[%s6 + $0x8] sm:$0xff]
    %v561 = vld [vmem:[%s6 + $0x10] sm:$0xff]
    %v562 = vld [vmem:[%s6 + $0x18] sm:$0xff]
    %v563 = vld [vmem:[%s6 + $0x20] sm:$0xff]
    %v564 = vld [vmem:[%s6 + $0x28] sm:$0xff]
    %v565 = vld [vmem:[%s6 + $0x30] sm:$0xff]
    %v566 = vld [vmem:[%s6 + $0x38] sm:$0xff]
    %v567 = vld [vmem:[%s6 + $0x40] sm:$0xff]
    %v568 = vld [vmem:[%s6 + $0x48] sm:$0xff]
    %v569 = vld [vmem:[%s6 + $0x50] sm:$0xff]
    %v570 = vld [vmem:[%s6 + $0x58] sm:$0xff]
    %v571 = vld [vmem:[%s6 + $0x60] sm:$0xff]
    %v572 = vld [vmem:[%s6 + $0x68] sm:$0xff]
    %v573 = vld [vmem:[%s6 + $0x70] sm:$0xff]
    %v574 = vld [vmem:[%s6 + $0x78] sm:$0xff]
    %575 = vmatprep.subr.mxu0 0.0
    %576 = vmatpush1.msra.mxu0 %v574
    %577 = vmatprep.subr.mxu0 0.0
    %578 = vmatpush1.msra.mxu0 %v573
    %579 = vmatprep.subr.mxu0 0.0
    %580 = vmatpush1.msra.mxu0 %v572
    %581 = vmatprep.subr.mxu0 0.0
    %582 = vmatpush1.msra.mxu0 %v571
    %583 = vmatprep.subr.mxu0 0.0
    %584 = vmatpush1.msra.mxu0 %v570
    %585 = vmatprep.subr.mxu0 0.0
    %586 = vmatpush1.msra.mxu0 %v569
    %587 = vmatprep.subr.mxu0 0.0
    %588 = vmatpush1.msra.mxu0 %v568
    %589 = vmatprep.subr.mxu0 0.0
    %590 = vmatpush1.msra.mxu0 %v567
    %591 = vmatprep.subr.mxu0 0.0
    %592 = vmatpush1.msra.mxu0 %v566
    %593 = vmatprep.subr.mxu0 0.0
    %594 = vmatpush1.msra.mxu0 %v565
    %595 = vmatprep.subr.mxu0 0.0
    %596 = vmatpush1.msra.mxu0 %v564
    %597 = vmatprep.subr.mxu0 0.0
    %598 = vmatpush1.msra.mxu0 %v563
    %599 = vmatprep.subr.mxu0 0.0
    %600 = vmatpush1.msra.mxu0 %v562
    %601 = vmatprep.subr.mxu0 0.0
    %602 = vmatpush1.msra.mxu0 %v561
    %603 = vmatprep.subr.mxu0 0.0
    %604 = vmatpush1.msra.mxu0 %v560
    %605 = vmatprep.subr.mxu0 0.0
    %606 = vmatpush1.msra.mxu0 %v559
    %607 = vmatprep.subr.mxu0 0.0
    %608 = vmatpush2.msra.mxu0 0.0
    %609 = vmatprep.subr.mxu0 0.0
    %610 = vmatpush2.msra.mxu0 0.0
    %611 = vmatprep.subr.mxu0 0.0
    %612 = vmatpush2.msra.mxu0 0.0
    %613 = vmatprep.subr.mxu0 0.0
    %614 = vmatpush2.msra.mxu0 0.0
    %615 = vmatprep.subr.mxu0 0.0
    %616 = vmatpush2.msra.mxu0 0.0
    %617 = vmatprep.subr.mxu0 0.0
    %618 = vmatpush2.msra.mxu0 0.0
    %619 = vmatprep.subr.mxu0 0.0
    %620 = vmatpush2.msra.mxu0 0.0
    %621 = vmatprep.subr.mxu0 0.0
    %622 = vmatpush2.msra.mxu0 0.0
    %623 = vmatprep.subr.mxu0 0.0
    %624 = vmatpush2.msra.mxu0 0.0
    %625 = vmatprep.subr.mxu0 0.0
    %626 = vmatpush2.msra.mxu0 0.0
    %627 = vmatprep.subr.mxu0 0.0
    %628 = vmatpush2.msra.mxu0 0.0
    %629 = vmatprep.subr.mxu0 0.0
    %630 = vmatpush2.msra.mxu0 0.0
    %631 = vmatprep.subr.mxu0 0.0
    %632 = vmatpush2.msra.mxu0 0.0
    %633 = vmatprep.subr.mxu0 0.0
    %634 = vmatpush2.msra.mxu0 0.0
    %635 = vmatprep.subr.mxu0 0.0
    %636 = vmatpush2.msra.mxu0 0.0
    %637 = vmatprep.subr.mxu0 0.0
    %638 = vmatpush2.msra.mxu0 0.0
    %639 = vmatprep.mubr.f32.mxu0 0.0
    %640 = vmatmul.mubr.f32.gmra.mxu0 %v356
    %v641 = vpop.f32.mrf.mxu0
    %v642 = vadd.f32 0.0, %v641
    %v643 = vpop.f32.mrf.mxu0
    %644 = vmatprep.mubr.f32.mxu0 0.0
    %645 = vmatmul.mubr.f32.gmra.mxu0 %v357
    %v646 = vpop.f32.mrf.mxu0
    %v647 = vadd.f32 0.0, %v646
    %v648 = vpop.f32.mrf.mxu0
    %649 = vdwg.mxu0
    %s650 = sld [smem:[#allocation2]]
    %v651 = vstv %s650
    %v652 = vadd.f32 %v642, %v651
    %v653 = vadd.f32 %v647, %v651
    %v654 = vxor.u32 %v652, 2147483648
    %v655 = vxor.u32 %v653, 2147483648
    %v656 = vmul.f32 %v654, 1.442695
    %v657 = vpow.pop %v656
    %v658 = vmul.f32 %v655, 1.442695
    %v659 = vpow.pop %v658
    %v660 = vadd.f32 %v657, 1.0
    %v661 = vadd.f32 %v659, 1.0
    %v662 = vrcp.pop %v660
    %v663 = vmul.f32 1.0, %v662
    %v664 = vrcp.pop %v661
    %v665 = vmul.f32 1.0, %v664
    %668 = vset.pattern.permute.xlu0 0
    %669 = vperm.xlu0 %668, %v663
    %v670 = vpop.permute.xlu0 %669
    %671 = vset.pattern.permute.xlu0 0
    %672 = vperm.xlu0 %671, %v665
    %v673 = vpop.permute.xlu0 %672
    %v674 = vlaneseq
    %v675 = vand.u32 %v674, 127
    %v676 = vlaneseq
    %v677 = vshrl.u32 %v676, 7
    %v678 = vsub.s32 %v675, %v677
    %v679 = vrot.slane %v670, %v678
    %v680 = vlaneseq
    %v681 = vshrl.u32 %v680, 7
    %v682 = vsub.s32 %v675, %v681
    %v683 = vrot.slane %v673, %v682
    %v686 = vmul.f32 %v556, %v679
    %v687 = vmul.f32 %v558, %v683
    %v690 = vrot.slane %v687, 7
    %v691 = vsel %vm526, %v690, %v686
    %v693 = vsel %vm529, %v691, 0.0
    %694 = vadd.xlane.f32.xlu0 %v693
    %v695 = vpop.xlane.xlu0 %694
    %v696 = vadd.f32 %v695, 1e-08
    %v698 = vrot.slane %v696, 1
    %v701 = vrcp.pop %v696
    %v702 = vmul.f32 %v686, %v701
    %v703 = vrcp.pop %v698
    %v704 = vmul.f32 %v687, %v703
    %vm705 = vcmask 64512
    %v707 = vsel %vm705, %v702, 0
    %709 = vmatprep.subr.mxu0 0.0
    %710 = vmatpush1.msra.mxu0 0.0
    %711 = vmatprep.subr.mxu0 0.0
    %712 = vmatpush1.msra.mxu0 0.0
    %713 = vmatprep.subr.mxu0 0.0
    %714 = vmatpush1.msra.mxu0 0.0
    %715 = vmatprep.subr.mxu0 0.0
    %716 = vmatpush1.msra.mxu0 0.0
    %717 = vmatprep.subr.mxu0 0.0
    %718 = vmatpush1.msra.mxu0 0.0
    %719 = vmatprep.subr.mxu0 0.0
    %720 = vmatpush1.msra.mxu0 0.0
    %721 = vmatprep.subr.mxu0 0.0
    %722 = vmatpush1.msra.mxu0 0.0
    %723 = vmatprep.subr.mxu0 0.0
    %724 = vmatpush1.msra.mxu0 0.0
    %725 = vmatprep.subr.mxu0 0.0
    %726 = vmatpush1.msra.mxu0 0.0
    %727 = vmatprep.subr.mxu0 0.0
    %728 = vmatpush1.msra.mxu0 0.0
    %729 = vmatprep.subr.mxu0 0.0
    %730 = vmatpush1.msra.mxu0 0.0
    %731 = vmatprep.subr.mxu0 0.0
    %732 = vmatpush1.msra.mxu0 0.0
    %733 = vmatprep.subr.mxu0 0.0
    %734 = vmatpush1.msra.mxu0 0.0
    %735 = vmatprep.subr.mxu0 0.0
    %736 = vmatpush1.msra.mxu0 0.0
    %737 = vmatprep.subr.mxu0 0.0
    %738 = vmatpush1.msra.mxu0 0.0
    %739 = vmatprep.subr.mxu0 0.0
    %740 = vmatpush1.msra.mxu0 %v273
    %741 = vmatprep.subr.mxu0 0.0
    %742 = vmatpush2.msra.mxu0 0.0
    %743 = vmatprep.subr.mxu0 0.0
    %744 = vmatpush2.msra.mxu0 0.0
    %745 = vmatprep.subr.mxu0 0.0
    %746 = vmatpush2.msra.mxu0 0.0
    %747 = vmatprep.subr.mxu0 0.0
    %748 = vmatpush2.msra.mxu0 0.0
    %749 = vmatprep.subr.mxu0 0.0
    %750 = vmatpush2.msra.mxu0 0.0
    %751 = vmatprep.subr.mxu0 0.0
    %752 = vmatpush2.msra.mxu0 0.0
    %753 = vmatprep.subr.mxu0 0.0
    %754 = vmatpush2.msra.mxu0 0.0
    %755 = vmatprep.subr.mxu0 0.0
    %756 = vmatpush2.msra.mxu0 0.0
    %757 = vmatprep.subr.mxu0 0.0
    %758 = vmatpush2.msra.mxu0 0.0
    %759 = vmatprep.subr.mxu0 0.0
    %760 = vmatpush2.msra.mxu0 0.0
    %761 = vmatprep.subr.mxu0 0.0
    %762 = vmatpush2.msra.mxu0 0.0
    %763 = vmatprep.subr.mxu0 0.0
    %764 = vmatpush2.msra.mxu0 0.0
    %765 = vmatprep.subr.mxu0 0.0
    %766 = vmatpush2.msra.mxu0 0.0
    %767 = vmatprep.subr.mxu0 0.0
    %768 = vmatpush2.msra.mxu0 0.0
    %769 = vmatprep.subr.mxu0 0.0
    %770 = vmatpush2.msra.mxu0 0.0
    %771 = vmatprep.subr.mxu0 0.0
    %772 = vmatpush2.msra.mxu0 0.0
    %773 = vmatprep.mubr.f32.mxu0 0.0
    %774 = vmatmul.mubr.f32.gmra.mxu0 %v707
    %v775 = vpop.f32.mrf.mxu0
    %v776 = vadd.f32 0.0, %v775
    %v777 = vpop.f32.mrf.mxu0
    %778 = vdwg.mxu0
    %v780 = vsel %vm705, %v704, 0
    %782 = vmatprep.subr.mxu0 0.0
    %783 = vmatpush1.msra.mxu0 0.0
    %784 = vmatprep.subr.mxu0 0.0
    %785 = vmatpush1.msra.mxu0 0.0
    %786 = vmatprep.subr.mxu0 0.0
    %787 = vmatpush1.msra.mxu0 0.0
    %788 = vmatprep.subr.mxu0 0.0
    %789 = vmatpush1.msra.mxu0 0.0
    %790 = vmatprep.subr.mxu0 0.0
    %791 = vmatpush1.msra.mxu0 0.0
    %792 = vmatprep.subr.mxu0 0.0
    %793 = vmatpush1.msra.mxu0 0.0
    %794 = vmatprep.subr.mxu0 0.0
    %795 = vmatpush1.msra.mxu0 0.0
    %796 = vmatprep.subr.mxu0 0.0
    %797 = vmatpush1.msra.mxu0 0.0
    %798 = vmatprep.subr.mxu0 0.0
    %799 = vmatpush1.msra.mxu0 0.0
    %800 = vmatprep.subr.mxu0 0.0
    %801 = vmatpush1.msra.mxu0 0.0
    %802 = vmatprep.subr.mxu0 0.0
    %803 = vmatpush1.msra.mxu0 0.0
    %804 = vmatprep.subr.mxu0 0.0
    %805 = vmatpush1.msra.mxu0 0.0
    %806 = vmatprep.subr.mxu0 0.0
    %807 = vmatpush1.msra.mxu0 0.0
    %808 = vmatprep.subr.mxu0 0.0
    %809 = vmatpush1.msra.mxu0 0.0
    %810 = vmatprep.subr.mxu0 0.0
    %811 = vmatpush1.msra.mxu0 0.0
    %812 = vmatprep.subr.mxu0 0.0
    %813 = vmatpush1.msra.mxu0 %v279
    %814 = vmatprep.subr.mxu0 0.0
    %815 = vmatpush2.msra.mxu0 0.0
    %816 = vmatprep.subr.mxu0 0.0
    %817 = vmatpush2.msra.mxu0 0.0
    %818 = vmatprep.subr.mxu0 0.0
    %819 = vmatpush2.msra.mxu0 0.0
    %820 = vmatprep.subr.mxu0 0.0
    %821 = vmatpush2.msra.mxu0 0.0
    %822 = vmatprep.subr.mxu0 0.0
    %823 = vmatpush2.msra.mxu0 0.0
    %824 = vmatprep.subr.mxu0 0.0
    %825 = vmatpush2.msra.mxu0 0.0
    %826 = vmatprep.subr.mxu0 0.0
    %827 = vmatpush2.msra.mxu0 0.0
    %828 = vmatprep.subr.mxu0 0.0
    %829 = vmatpush2.msra.mxu0 0.0
    %830 = vmatprep.subr.mxu0 0.0
    %831 = vmatpush2.msra.mxu0 0.0
    %832 = vmatprep.subr.mxu0 0.0
    %833 = vmatpush2.msra.mxu0 0.0
    %834 = vmatprep.subr.mxu0 0.0
    %835 = vmatpush2.msra.mxu0 0.0
    %836 = vmatprep.subr.mxu0 0.0
    %837 = vmatpush2.msra.mxu0 0.0
    %838 = vmatprep.subr.mxu0 0.0
    %839 = vmatpush2.msra.mxu0 0.0
    %840 = vmatprep.subr.mxu0 0.0
    %841 = vmatpush2.msra.mxu0 0.0
    %842 = vmatprep.subr.mxu0 0.0
    %843 = vmatpush2.msra.mxu0 0.0
    %844 = vmatprep.subr.mxu0 0.0
    %845 = vmatpush2.msra.mxu0 0.0
    %846 = vmatprep.mubr.f32.mxu0 0.0
    %847 = vmatmul.mubr.f32.gmra.mxu0 %v780
    %v848 = vpop.f32.mrf.mxu0
    %v849 = vadd.f32 0.0, %v848
    %v850 = vpop.f32.mrf.mxu0
    %851 = vdwg.mxu0
    %v852 = vld [vmem:[%s8] sm:$0xff]
    %v853 = vld [vmem:[%s8 + $0x8] sm:$0xff]
    %v854 = vld [vmem:[%s8 + $0x10] sm:$0xff]
    %v855 = vld [vmem:[%s8 + $0x18] sm:$0xff]
    %v856 = vld [vmem:[%s8 + $0x20] sm:$0xff]
    %v857 = vld [vmem:[%s8 + $0x28] sm:$0xff]
    %v858 = vld [vmem:[%s8 + $0x30] sm:$0xff]
    %v859 = vld [vmem:[%s8 + $0x38] sm:$0xff]
    %v860 = vld [vmem:[%s8 + $0x40] sm:$0xff]
    %v861 = vld [vmem:[%s8 + $0x48] sm:$0xff]
    %v862 = vld [vmem:[%s8 + $0x50] sm:$0xff]
    %v863 = vld [vmem:[%s8 + $0x58] sm:$0xff]
    %v864 = vld [vmem:[%s8 + $0x60] sm:$0xff]
    %v865 = vld [vmem:[%s8 + $0x68] sm:$0xff]
    %v866 = vld [vmem:[%s8 + $0x70] sm:$0xff]
    %v867 = vld [vmem:[%s8 + $0x78] sm:$0xff]
    %v868 = vld [vmem:[%s9] sm:$0x1]
    %v870 = vlaneseq
    %v871 = vshrl.u32 %v870, 7
    %v872 = vsub.s32 0, %v871
    %v873 = vrot.slane %v868, %v872
    %v877 = vrot.slane %v849, 7
    %v878 = vsel %vm526, %v877, %v776
    %880 = vmatprep.subr.mxu0 0.0
    %881 = vmatpush1.msra.mxu0 %v867
    %882 = vmatprep.subr.mxu0 0.0
    %883 = vmatpush1.msra.mxu0 %v866
    %884 = vmatprep.subr.mxu0 0.0
    %885 = vmatpush1.msra.mxu0 %v865
    %886 = vmatprep.subr.mxu0 0.0
    %887 = vmatpush1.msra.mxu0 %v864
    %888 = vmatprep.subr.mxu0 0.0
    %889 = vmatpush1.msra.mxu0 %v863
    %890 = vmatprep.subr.mxu0 0.0
    %891 = vmatpush1.msra.mxu0 %v862
    %892 = vmatprep.subr.mxu0 0.0
    %893 = vmatpush1.msra.mxu0 %v861
    %894 = vmatprep.subr.mxu0 0.0
    %895 = vmatpush1.msra.mxu0 %v860
    %896 = vmatprep.subr.mxu0 0.0
    %897 = vmatpush1.msra.mxu0 %v859
    %898 = vmatprep.subr.mxu0 0.0
    %899 = vmatpush1.msra.mxu0 %v858
    %900 = vmatprep.subr.mxu0 0.0
    %901 = vmatpush1.msra.mxu0 %v857
    %902 = vmatprep.subr.mxu0 0.0
    %903 = vmatpush1.msra.mxu0 %v856
    %904 = vmatprep.subr.mxu0 0.0
    %905 = vmatpush1.msra.mxu0 %v855
    %906 = vmatprep.subr.mxu0 0.0
    %907 = vmatpush1.msra.mxu0 %v854
    %908 = vmatprep.subr.mxu0 0.0
    %909 = vmatpush1.msra.mxu0 %v853
    %910 = vmatprep.subr.mxu0 0.0
    %911 = vmatpush1.msra.mxu0 %v852
    %912 = vmatprep.subr.mxu0 0.0
    %913 = vmatpush2.msra.mxu0 0.0
    %914 = vmatprep.subr.mxu0 0.0
    %915 = vmatpush2.msra.mxu0 0.0
    %916 = vmatprep.subr.mxu0 0.0
    %917 = vmatpush2.msra.mxu0 0.0
    %918 = vmatprep.subr.mxu0 0.0
    %919 = vmatpush2.msra.mxu0 0.0
    %920 = vmatprep.subr.mxu0 0.0
    %921 = vmatpush2.msra.mxu0 0.0
    %922 = vmatprep.subr.mxu0 0.0
    %923 = vmatpush2.msra.mxu0 0.0
    %924 = vmatprep.subr.mxu0 0.0
    %925 = vmatpush2.msra.mxu0 0.0
    %926 = vmatprep.subr.mxu0 0.0
    %927 = vmatpush2.msra.mxu0 0.0
    %928 = vmatprep.subr.mxu0 0.0
    %929 = vmatpush2.msra.mxu0 0.0
    %930 = vmatprep.subr.mxu0 0.0
    %931 = vmatpush2.msra.mxu0 0.0
    %932 = vmatprep.subr.mxu0 0.0
    %933 = vmatpush2.msra.mxu0 0.0
    %934 = vmatprep.subr.mxu0 0.0
    %935 = vmatpush2.msra.mxu0 0.0
    %936 = vmatprep.subr.mxu0 0.0
    %937 = vmatpush2.msra.mxu0 0.0
    %938 = vmatprep.subr.mxu0 0.0
    %939 = vmatpush2.msra.mxu0 0.0
    %940 = vmatprep.subr.mxu0 0.0
    %941 = vmatpush2.msra.mxu0 0.0
    %942 = vmatprep.subr.mxu0 0.0
    %943 = vmatpush2.msra.mxu0 0.0
    %944 = vmatprep.mubr.f32.mxu0 0.0
    %945 = vmatmul.mubr.f32.gmra.mxu0 %v878
    %v946 = vpop.f32.mrf.mxu0
    %v947 = vadd.f32 %v873, %v946
    %v948 = vpop.f32.mrf.mxu0
    %949 = vdwg.mxu0
    %950 = vst [vmem:[#allocation9] sm:$0x3] %v947
    %v951 = vsel %vm526, %v683, %v679
    %953 = vst.msk [vmem:[#allocation10] sm:$0x3] %vm529, %v951
    // Predicated region
    $region54: #{tpu_custom_call.1} parent=1 // pred_check
      _
    $region55: #{tpu_custom_call.1} parent=1 // pred_check_branch
      %955 = sbr.rel (0) target = $region57
    $region56: #{tpu_custom_call.1} parent=1 // pred_region
      %s957 = ssub.s32 32, 32
      %958 = vsyncadd [#allocation5], %s957
      %s960 = sshll.u32 [#allocation9], 4
      %s961 = int_to_ptr.vmem [resolvable:$true] %s960
      %963 = dma.vmem_to_hbm [thread:$0]  %s961, 32, %s10, [#allocation5]
    $region57: #{tpu_custom_call.1} parent=1 // pred_fallthru
      _
    // Predicated region
    $region58: #{tpu_custom_call.1} parent=1 // pred_check
      _
    $region59: #{tpu_custom_call.1} parent=1 // pred_check_branch
      %965 = sbr.rel (0) target = $region61
    $region60: #{tpu_custom_call.1} parent=1 // pred_region
      %s967 = ssub.s32 32, 32
      %968 = vsyncadd [#allocation11], %s967
      %s970 = sshll.u32 [#allocation10], 4
      %s971 = int_to_ptr.vmem [resolvable:$true] %s970
      %973 = dma.vmem_to_hbm [thread:$0]  %s971, 32, %s11, [#allocation11]
    $region61: #{tpu_custom_call.1} parent=1 // pred_fallthru
      _
    // Predicated region
    $region62: #{tpu_custom_call.1} parent=1 // pred_check
      _
    $region63: #{tpu_custom_call.1} parent=1 // pred_check_branch
      %975 = sbr.rel (0) target = $region65
    $region64: #{tpu_custom_call.1} parent=1 // pred_region
      %976 = dma.done [#allocation5], 32
    $region65: #{tpu_custom_call.1} parent=1 // pred_fallthru
      _
    // Predicated region
    $region66: #{tpu_custom_call.1} parent=1 // pred_check
      _
    $region67: #{tpu_custom_call.1} parent=1 // pred_check_branch
      %978 = sbr.rel (0) target = $region69
    $region68: #{tpu_custom_call.1} parent=1 // pred_region
      %979 = dma.done [#allocation11], 32
    $region69: #{tpu_custom_call.1} parent=1 // pred_fallthru
      _
    %980 = vsyncpa [#allocation4], 1
    %981 = vsyncpa [#allocation7], 1
    %982 = vsyncpa [#allocation5], 1
    %983 = vsyncpa [#allocation11], 1

</llo_original>
